<compile_context>
chip_gen: v7x
topology: tpu7x:2x2x1
jax: 0.10.0
libtpu: 0.0.40
codegen_flags: <defaults>
</compile_context>

<pallas_src>
import functools

import jax
import jax.numpy as jnp
import numpy as np
from jax.experimental import pallas as pl
from jax.experimental.pallas import tpu as pltpu


def _round_up(x, m):
    return (x + m - 1) // m * m


def _pack_bf16_halves(table_f32):
    """(R, H) float -> (R, H//2) uint32.

    Column j of the packed table holds bf16(col j) in the low 16 bits and
    bf16(col j + H//2) in the high 16 bits, so the in-kernel unpack is just
    shift/mask + bitcast + a lane-aligned concat (no permutation needed).
    """
    _, H = table_f32.shape
    tb = table_f32.astype(jnp.bfloat16)
    lo = jax.lax.bitcast_convert_type(tb[:, : H // 2], jnp.uint16).astype(jnp.uint32)
    hi = jax.lax.bitcast_convert_type(tb[:, H // 2:], jnp.uint16).astype(jnp.uint32)
    return lo | (hi << 16)


def create_position_ids_from_input_ids(input_ids, padding_idx,
                                       past_key_values_length=0, start_position=0):
    mask = (input_ids != padding_idx).astype(jnp.int32)
    incremental = (jnp.cumsum(mask, axis=1) + past_key_values_length) * mask
    return incremental + padding_idx + start_position


def _embeddings_kernel(ids_sref,                    # scalar prefetch (SMEM): (Np,) int32 word ids
                       pos_ref, tt_ref,             # (T, 1) int32 blocks
                       word_hbm,                    # (V, Wc) word table in HBM (f32 or packed u32)
                       pos_tab_ref,                 # (P, H) position table, VMEM resident
                       type_ref,                    # (TV, H) f32 token-type (+ time-step) table
                       ln_w_ref, ln_b_ref,          # (1, H) f32
                       out_ref,                     # (T, H) f32
                       wrows, sem,                  # scratch: (2T, Wc) gather buf, (2,) DMA sems
                       *, eps, unroll, packed_words):
    T, H = out_ref.shape
    i = pl.program_id(0)
    nblk = pl.num_programs(0)
    slot = i % 2

    def issue_block(block_idx, slot_idx):
        base = block_idx * T
        dst0 = slot_idx * T

        def body(t, carry):
            wid = ids_sref[base + t]
            pltpu.make_async_copy(
                word_hbm.at[pl.ds(wid, 1)],
                wrows.at[pl.ds(dst0 + t, 1)],
                sem.at[slot_idx],
            ).start()
            return carry

        jax.lax.fori_loop(0, T, body, 0, unroll=unroll)

    # Prime the pipeline on the very first step.
    @pl.when(i == 0)
    def _():
        issue_block(0, 0)

    # Cross-block prefetch: issue block i+1's row gathers into the other buffer half
    # while this block is still being processed (its ids are already in SMEM).
    @pl.when(i + 1 < nblk)
    def _():
        issue_block(i + 1, (i + 1) % 2)

    # ---- Independent work while the word-row gathers are in flight. ----
    # Position embedding: VMEM-resident table, gathered via a one-hot matmul on the
    # otherwise idle MXU (exact for a 0/1 one-hot with f32 accumulation).
    P = pos_tab_ref.shape[0]
    pos_ids = pos_ref[...]                                           # (T, 1) int32
    onehot = jax.lax.broadcasted_iota(jnp.int32, (T, P), 1) == pos_ids
    pos_rows = jnp.dot(onehot.astype(pos_tab_ref.dtype), pos_tab_ref[...],
                       preferred_element_type=jnp.float32)           # (T, H) f32

    # Token-type (+ folded static time-step) embedding: tiny table, VPU select.
    tt = tt_ref[...]                                                 # (T, 1) int32
    small = jnp.broadcast_to(type_ref[pl.ds(0, 1), :], (T, H))
    for v in range(1, type_ref.shape[0]):
        small = jnp.where(tt == v, type_ref[pl.ds(v, 1), :], small)

    # ---- Aggregate wait: all row copies of this block signalled sem[slot]; one
    # descriptor covering the whole (T, Wc) half waits on the same byte count.
    off = pl.multiple_of(slot * T, 8)
    half = wrows.at[pl.ds(off, T)]
    pltpu.make_async_copy(half, half, sem.at[slot]).wait()

    if packed_words:
        u = wrows[pl.ds(off, T), :]                                  # (T, H//2) uint32
        first = pltpu.bitcast(u << 16, jnp.float32)                  # cols [0, H//2)
        second = pltpu.bitcast(u & jnp.uint32(0xFFFF0000), jnp.float32)  # cols [H//2, H)
        word_rows = jnp.concatenate([first, second], axis=-1)        # (T, H) f32
    else:
        word_rows = wrows[pl.ds(off, T), :].astype(jnp.float32)

    emb = word_rows + pos_rows + small

    # LayerNorm over the hidden axis (f32 math).
    mean = jnp.mean(emb, axis=-1, keepdims=True)
    var = jnp.mean(jnp.square(emb - mean), axis=-1, keepdims=True)
    normed = (emb - mean) * jax.lax.rsqrt(var + eps)
    out_ref[...] = (normed * ln_w_ref[...] + ln_b_ref[...]).astype(out_ref.dtype)


def xlm_roberta_embeddings(input_ids, token_type_ids, params, *,
                           padding_idx, past_key_values_length=0, start_position=0,
                           time_step=-1, layer_norm_eps=1e-5,
                           tokens_per_block=None, table_dtype=jnp.bfloat16,
                           issue_unroll=8):
    word_emb, pos_emb, type_emb, time_emb, ln_w, ln_b = params
    B, S = input_ids.shape
    H = word_emb.shape[1]
    N = B * S
    f32 = jnp.float32

    if token_type_ids is None:                       # buffered default in the module
        token_type_ids = jnp.zeros_like(input_ids)

    # Position ids (cumsum over the non-pad mask) -- cheap, stays in XLA.
    pos_ids = create_position_ids_from_input_ids(
        input_ids, padding_idx, past_key_values_length, start_position)

    # Static per-call time-step row, pre-folded into the tiny token-type table so the
    # kernel applies both with a single VPU select.
    if isinstance(time_step, (int, np.integer)):
        extra = (time_emb[int(time_step)].astype(f32)[None, :] if int(time_step) != -1
                 else jnp.zeros((1, H), f32))
    else:  # traced time_step (e.g. under jit)
        ts = jnp.asarray(time_step)
        extra = jnp.where(ts == -1, jnp.zeros((H,), f32),
                          time_emb[jnp.maximum(ts, 0)].astype(f32))[None, :]
    type_plus_extra = type_emb.astype(f32) + extra                    # (type_vocab, H)

    # Tile selection + padding of N (never fall back to one huge (N, H) tile).
    if tokens_per_block is None:
        tokens_per_block = 512        # safe for v7x's 64 MiB; v5e/v6e may pass 1024-2048
    T = min(_round_up(int(tokens_per_block), 8), _round_up(N, 8))
    Np = _round_up(N, T)
    nblk = Np // T

    ids_flat = input_ids.reshape(N).astype(jnp.int32)
    pos_flat = pos_ids.reshape(N).astype(jnp.int32)
    tt_flat = token_type_ids.reshape(N).astype(jnp.int32)
    if Np != N:
        pad = Np - N
        ids_flat = jnp.concatenate([ids_flat, jnp.full((pad,), padding_idx, jnp.int32)])
        pos_flat = jnp.concatenate([pos_flat, jnp.full((pad,), padding_idx, jnp.int32)])
        tt_flat = jnp.concatenate([tt_flat, jnp.zeros((pad,), jnp.int32)])

    use_bf16 = np.dtype(table_dtype) == np.dtype(jnp.bfloat16)
    packed_words = bool(use_bf16 and H % 2 == 0)
    if packed_words:
        word_tab = _pack_bf16_halves(word_emb)        # (V, H//2) uint32, half the HBM bytes
        pos_tab = pos_emb.astype(jnp.bfloat16)        # VMEM resident, gathered on the MXU
    else:
        word_tab = word_emb.astype(f32)
        pos_tab = pos_emb.astype(f32)
    Wc = word_tab.shape[1]

    # VMEM budget from actual buffer sizes (+headroom); tables are double-buffered by
    # the pipeline even though their block index is constant.
    wrow_bytes = 2 * T * Wc * 4
    resident = 2 * (pos_tab.size * pos_tab.dtype.itemsize + type_plus_extra.size * 4)
    blocks = 2 * (T * H * 4 + 2 * T * 128 * 4) + 4 * H * 4
    vmem_limit = int(min(max(wrow_bytes + resident + blocks + (8 << 20), 32 << 20),
                         100 << 20))

    kernel = functools.partial(_embeddings_kernel,
                               eps=float(layer_norm_eps),
                               unroll=max(1, min(int(issue_unroll), T)),
                               packed_words=packed_words)

    out = pl.pallas_call(
        kernel,
        out_shape=jax.ShapeDtypeStruct((Np, H), f32),
        grid_spec=pltpu.PrefetchScalarGridSpec(
            num_scalar_prefetch=1,                 # word ids -> SMEM (drive the row DMAs)
            grid=(nblk,),
            in_specs=[
                pl.BlockSpec((T, 1), lambda i, ids: (i, 0)),              # position ids
                pl.BlockSpec((T, 1), lambda i, ids: (i, 0)),              # token-type ids
                pl.BlockSpec(memory_space=pl.ANY),                        # word table (HBM)
                pl.BlockSpec(pos_tab.shape, lambda i, ids: (0, 0)),       # pos table (VMEM res.)
                pl.BlockSpec(type_plus_extra.shape, lambda i, ids: (0, 0)),
                pl.BlockSpec((1, H), lambda i, ids: (0, 0)),              # LN weight
                pl.BlockSpec((1, H), lambda i, ids: (0, 0)),              # LN bias
            ],
            out_specs=pl.BlockSpec((T, H), lambda i, ids: (i, 0)),
            scratch_shapes=[
                pltpu.VMEM((2 * T, Wc), word_tab.dtype),   # double-buffered gathered rows
                pltpu.SemaphoreType.DMA((2,)),             # one aggregate sem per buffer half
            ]),
        compiler_params=pltpu.CompilerParams(
            # Blocks are coupled by the cross-block gather prefetch -> sequential grid.
            dimension_semantics=("arbitrary",),
            vmem_limit_bytes=vmem_limit),
    )(ids_flat, pos_flat.reshape(Np, 1), tt_flat.reshape(Np, 1),
      word_tab, pos_tab, type_plus_extra,
      ln_w.astype(f32).reshape(1, H), ln_b.astype(f32).reshape(1, H))

    return out[:N].reshape(B, S, H)


def reference_forward(input_ids, token_type_ids, params, *, padding_idx,
                      past_key_values_length=0, start_position=0, time_step=-1,
                      layer_norm_eps=1e-5, table_dtype=jnp.float32):
    """Pure-JAX reference matching the PyTorch module; `table_dtype` mirrors the
    kernel's word/position table storage precision (f32 = exact module semantics)."""
    word_emb, pos_emb, type_emb, time_emb, ln_w, ln_b = params
    w = word_emb.astype(table_dtype).astype(jnp.float32)
    p = pos_emb.astype(table_dtype).astype(jnp.float32)
    if token_type_ids is None:
        token_type_ids = jnp.zeros_like(input_ids)
    pos_ids = create_position_ids_from_input_ids(
        input_ids, padding_idx, past_key_values_length, start_position)
    emb = w[input_ids] + type_emb.astype(jnp.float32)[token_type_ids] + p[pos_ids]
    if time_step != -1:
        emb = emb + time_emb.astype(jnp.float32)[jnp.full_like(input_ids, time_step)]
    mean = jnp.mean(emb, axis=-1, keepdims=True)
    var = jnp.mean((emb - mean) ** 2, axis=-1, keepdims=True)
    normed = (emb - mean) * jax.lax.rsqrt(var + layer_norm_eps)
    return normed * ln_w + ln_b


if __name__ == "__main__":
    # Small synthetic config.  H is a multiple of 256 so the bf16-packed halves
    # concatenate on exact 128-lane boundaries; word/pos rows at padding_idx are
    # zeroed to mirror nn.Embedding(padding_idx=...) (required for pad-token parity
    # with the PyTorch reference).
    B, S, H = 2, 8, 256
    vocab_size, max_position_embeddings = 64, 64
    type_vocab_size, max_time_steps = 2, 16
    pad_token_id = 1
    layer_norm_eps = 1e-5

    key = jax.random.PRNGKey(0)
    k_w, k_p, k_t, k_ts, k_lw, k_lb, k_ids, k_tt, k_ids2 = jax.random.split(key, 9)

    word_emb = 0.02 * jax.random.normal(k_w, (vocab_size, H), jnp.float32)
    word_emb = word_emb.at[pad_token_id].set(0.0)
    pos_emb = 0.02 * jax.random.normal(k_p, (max_position_embeddings, H), jnp.float32)
    pos_emb = pos_emb.at[pad_token_id].set(0.0)
    type_emb = 0.02 * jax.random.normal(k_t, (type_vocab_size, H), jnp.float32)
    time_emb = 0.02 * jax.random.normal(k_ts, (max_time_steps, H), jnp.float32)
    ln_w = 1.0 + 0.1 * jax.random.normal(k_lw, (H,), jnp.float32)
    ln_b = 0.1 * jax.random.normal(k_lb, (H,), jnp.float32)
    params = (word_emb, pos_emb, type_emb, time_emb, ln_w, ln_b)

    # Case 1: bf16(-packed) tables, two grid blocks (exercises cross-block prefetch
    # and the aggregate DMA waits), mixed token types, active time step.
    input_ids = jax.random.randint(k_ids, (B, S), 2, vocab_size, dtype=jnp.int32)
    input_ids = input_ids.at[1, -2:].set(pad_token_id)
    token_type_ids = jax.random.randint(k_tt, (B, S), 0, type_vocab_size, dtype=jnp.int32)

    out1 = xlm_roberta_embeddings(input_ids, token_type_ids, params,
                                  padding_idx=pad_token_id, time_step=3,
                                  layer_norm_eps=layer_norm_eps,
                                  tokens_per_block=8)
    out1 = jax.block_until_ready(out1)
    ref1 = reference_forward(input_ids, token_type_ids, params,
                             padding_idx=pad_token_id, time_step=3,
                             layer_norm_eps=layer_norm_eps, table_dtype=jnp.bfloat16)
    np.testing.assert_allclose(np.asarray(out1), np.asarray(ref1), rtol=1e-4, atol=1e-4)

    # Case 2: exact-f32 table path, default (zeros) token types, N not a multiple of
    # the tile (exercises padding), past_key_values_length, no time step.
    B2, S2 = 2, 9
    input_ids2 = jax.random.randint(k_ids2, (B2, S2), 2, vocab_size, dtype=jnp.int32)
    input_ids2 = input_ids2.at[0, -3:].set(pad_token_id)

    out2 = xlm_roberta_embeddings(input_ids2, None, params,
                                  padding_idx=pad_token_id,
                                  past_key_values_length=2, time_step=-1,
                                  layer_norm_eps=layer_norm_eps,
                                  table_dtype=jnp.float32)
    out2 = jax.block_until_ready(out2)
    ref2 = reference_forward(input_ids2, None, params,
                             padding_idx=pad_token_id, past_key_values_length=2,
                             time_step=-1, layer_norm_eps=layer_norm_eps,
                             table_dtype=jnp.float32)
    np.testing.assert_allclose(np.asarray(out2), np.asarray(ref2), rtol=1e-4, atol=1e-4)

    print("KERNEL_OK")
</pallas_src>

<mosaic_0001>
module attributes {stable_mosaic.version = 11 : i64} {
  func.func @_embeddings_kernel(%arg0: i32, %arg1: memref<16xi32, #tpu.memory_space<smem>>, %arg2: memref<8x1xi32, #tpu.memory_space<vmem>>, %arg3: memref<8x1xi32, #tpu.memory_space<vmem>>, %arg4: memref<64x128xi32, #tpu.memory_space<any>>, %arg5: memref<64x256xbf16, #tpu.memory_space<vmem>>, %arg6: memref<2x256xf32, #tpu.memory_space<vmem>>, %arg7: memref<1x256xf32, #tpu.memory_space<vmem>>, %arg8: memref<1x256xf32, #tpu.memory_space<vmem>>, %arg9: memref<8x256xf32, #tpu.memory_space<vmem>>, %arg10: memref<16x128xi32, #tpu.memory_space<vmem>>, %arg11: memref<2x!tpu.dma_semaphore, #tpu.memory_space<semaphore_mem>>) attributes {dimension_semantics = [#tpu.dimension_semantics<arbitrary>], iteration_bounds = array<i64: 2>, scalar_prefetch = 1 : i64, scratch_operands = 2 : i64, tpu.core_type = #tpu.core_type<tc>, window_params = [{transform_indices = @transform_0, window_bounds = array<i64: 8, 1>}, {transform_indices = @transform_1, window_bounds = array<i64: 8, 1>}, {}, {pipeline_mode = #tpu.pipeline_mode<synchronous>, transform_indices = @transform_3, window_bounds = array<i64: 64, 256>}, {pipeline_mode = #tpu.pipeline_mode<synchronous>, transform_indices = @transform_4, window_bounds = array<i64: 2, 256>}, {pipeline_mode = #tpu.pipeline_mode<synchronous>, transform_indices = @transform_5, window_bounds = array<i64: 1, 256>}, {pipeline_mode = #tpu.pipeline_mode<synchronous>, transform_indices = @transform_6, window_bounds = array<i64: 1, 256>}, {transform_indices = @transform_7, window_bounds = array<i64: 8, 256>}]} {
    %c2_i32 = arith.constant 2 : i32
    %c0_i32 = arith.constant 0 : i32
    %0 = arith.cmpi eq, %c2_i32, %c0_i32 : i32
    %c1_i32 = arith.constant 1 : i32
    %1 = arith.select %0, %c1_i32, %c2_i32 : i32
    %2 = arith.remsi %arg0, %1 : i32
    %c0_i32_0 = arith.constant 0 : i32
    %3 = arith.cmpi ne, %2, %c0_i32_0 : i32
    %c0_i32_1 = arith.constant 0 : i32
    %4 = arith.cmpi slt, %2, %c0_i32_1 : i32
    %c0_i32_2 = arith.constant 0 : i32
    %5 = arith.cmpi slt, %1, %c0_i32_2 : i32
    %6 = arith.xori %4, %5 : i1
    %7 = arith.andi %6, %3 : i1
    %8 = arith.addi %2, %1 : i32
    %9 = arith.select %7, %8, %2 : i32
    %c0_i32_3 = arith.constant 0 : i32
    %10 = arith.cmpi eq, %arg0, %c0_i32_3 : i32
    %11 = arith.extui %10 : i1 to i32
    %c0_i32_4 = arith.constant 0 : i32
    %12 = arith.cmpi ne, %11, %c0_i32_4 : i32
    scf.if %12 {
      %c0_i32_31 = arith.constant 0 : i32
      %c0_i32_32 = arith.constant 0 : i32
      %80 = arith.addi %c0_i32_32, %c0_i32_31 : i32
      %81 = arith.index_cast %80 : i32 to index
      %82 = memref.load %arg1[%81] : memref<16xi32, #tpu.memory_space<smem>>
      %c0_i32_33 = arith.constant 0 : i32
      %83 = arith.addi %c0_i32_33, %c0_i32_31 : i32
      %c0_i32_34 = arith.constant 0 : i32
      %c0_i32_35 = arith.constant 0 : i32
      %84 = tpu.memref_slice %arg4[%82, %c0_i32_35] : memref<64x128xi32, #tpu.memory_space<any>> -> memref<1x128xi32, #tpu.memory_space<any>>
      %c0_i32_36 = arith.constant 0 : i32
      %85 = tpu.memref_slice %arg10[%83, %c0_i32_36] : memref<16x128xi32, #tpu.memory_space<vmem>> -> memref<1x128xi32, #tpu.memory_space<vmem>>
      %86 = tpu.memref_slice %arg11[%c0_i32_34] : memref<2x!tpu.dma_semaphore, #tpu.memory_space<semaphore_mem>> -> memref<1x!tpu.dma_semaphore, #tpu.memory_space<semaphore_mem>>
      %87 = tpu.memref_squeeze %86 : memref<1x!tpu.dma_semaphore, #tpu.memory_space<semaphore_mem>> -> memref<!tpu.dma_semaphore, #tpu.memory_space<semaphore_mem>>
      tpu.enqueue_dma source(%84 : memref<1x128xi32, #tpu.memory_space<any>>) target(%85 : memref<1x128xi32, #tpu.memory_space<vmem>>) target_semaphore(%87 : memref<!tpu.dma_semaphore, #tpu.memory_space<semaphore_mem>>)
      %c1_i32_37 = arith.constant 1 : i32
      %c0_i32_38 = arith.constant 0 : i32
      %88 = arith.addi %c0_i32_38, %c1_i32_37 : i32
      %89 = arith.index_cast %88 : i32 to index
      %90 = memref.load %arg1[%89] : memref<16xi32, #tpu.memory_space<smem>>
      %c0_i32_39 = arith.constant 0 : i32
      %91 = arith.addi %c0_i32_39, %c1_i32_37 : i32
      %c0_i32_40 = arith.constant 0 : i32
      %c0_i32_41 = arith.constant 0 : i32
      %92 = tpu.memref_slice %arg4[%90, %c0_i32_41] : memref<64x128xi32, #tpu.memory_space<any>> -> memref<1x128xi32, #tpu.memory_space<any>>
      %c0_i32_42 = arith.constant 0 : i32
      %93 = tpu.memref_slice %arg10[%91, %c0_i32_42] : memref<16x128xi32, #tpu.memory_space<vmem>> -> memref<1x128xi32, #tpu.memory_space<vmem>>
      %94 = tpu.memref_slice %arg11[%c0_i32_40] : memref<2x!tpu.dma_semaphore, #tpu.memory_space<semaphore_mem>> -> memref<1x!tpu.dma_semaphore, #tpu.memory_space<semaphore_mem>>
      %95 = tpu.memref_squeeze %94 : memref<1x!tpu.dma_semaphore, #tpu.memory_space<semaphore_mem>> -> memref<!tpu.dma_semaphore, #tpu.memory_space<semaphore_mem>>
      tpu.enqueue_dma source(%92 : memref<1x128xi32, #tpu.memory_space<any>>) target(%93 : memref<1x128xi32, #tpu.memory_space<vmem>>) target_semaphore(%95 : memref<!tpu.dma_semaphore, #tpu.memory_space<semaphore_mem>>)
      %c2_i32_43 = arith.constant 2 : i32
      %c0_i32_44 = arith.constant 0 : i32
      %96 = arith.addi %c0_i32_44, %c2_i32_43 : i32
      %97 = arith.index_cast %96 : i32 to index
      %98 = memref.load %arg1[%97] : memref<16xi32, #tpu.memory_space<smem>>
      %c0_i32_45 = arith.constant 0 : i32
      %99 = arith.addi %c0_i32_45, %c2_i32_43 : i32
      %c0_i32_46 = arith.constant 0 : i32
      %c0_i32_47 = arith.constant 0 : i32
      %100 = tpu.memref_slice %arg4[%98, %c0_i32_47] : memref<64x128xi32, #tpu.memory_space<any>> -> memref<1x128xi32, #tpu.memory_space<any>>
      %c0_i32_48 = arith.constant 0 : i32
      %101 = tpu.memref_slice %arg10[%99, %c0_i32_48] : memref<16x128xi32, #tpu.memory_space<vmem>> -> memref<1x128xi32, #tpu.memory_space<vmem>>
      %102 = tpu.memref_slice %arg11[%c0_i32_46] : memref<2x!tpu.dma_semaphore, #tpu.memory_space<semaphore_mem>> -> memref<1x!tpu.dma_semaphore, #tpu.memory_space<semaphore_mem>>
      %103 = tpu.memref_squeeze %102 : memref<1x!tpu.dma_semaphore, #tpu.memory_space<semaphore_mem>> -> memref<!tpu.dma_semaphore, #tpu.memory_space<semaphore_mem>>
      tpu.enqueue_dma source(%100 : memref<1x128xi32, #tpu.memory_space<any>>) target(%101 : memref<1x128xi32, #tpu.memory_space<vmem>>) target_semaphore(%103 : memref<!tpu.dma_semaphore, #tpu.memory_space<semaphore_mem>>)
      %c3_i32 = arith.constant 3 : i32
      %c0_i32_49 = arith.constant 0 : i32
      %104 = arith.addi %c0_i32_49, %c3_i32 : i32
      %105 = arith.index_cast %104 : i32 to index
      %106 = memref.load %arg1[%105] : memref<16xi32, #tpu.memory_space<smem>>
      %c0_i32_50 = arith.constant 0 : i32
      %107 = arith.addi %c0_i32_50, %c3_i32 : i32
      %c0_i32_51 = arith.constant 0 : i32
      %c0_i32_52 = arith.constant 0 : i32
      %108 = tpu.memref_slice %arg4[%106, %c0_i32_52] : memref<64x128xi32, #tpu.memory_space<any>> -> memref<1x128xi32, #tpu.memory_space<any>>
      %c0_i32_53 = arith.constant 0 : i32
      %109 = tpu.memref_slice %arg10[%107, %c0_i32_53] : memref<16x128xi32, #tpu.memory_space<vmem>> -> memref<1x128xi32, #tpu.memory_space<vmem>>
      %110 = tpu.memref_slice %arg11[%c0_i32_51] : memref<2x!tpu.dma_semaphore, #tpu.memory_space<semaphore_mem>> -> memref<1x!tpu.dma_semaphore, #tpu.memory_space<semaphore_mem>>
      %111 = tpu.memref_squeeze %110 : memref<1x!tpu.dma_semaphore, #tpu.memory_space<semaphore_mem>> -> memref<!tpu.dma_semaphore, #tpu.memory_space<semaphore_mem>>
      tpu.enqueue_dma source(%108 : memref<1x128xi32, #tpu.memory_space<any>>) target(%109 : memref<1x128xi32, #tpu.memory_space<vmem>>) target_semaphore(%111 : memref<!tpu.dma_semaphore, #tpu.memory_space<semaphore_mem>>)
      %c4_i32 = arith.constant 4 : i32
      %c0_i32_54 = arith.constant 0 : i32
      %112 = arith.addi %c0_i32_54, %c4_i32 : i32
      %113 = arith.index_cast %112 : i32 to index
      %114 = memref.load %arg1[%113] : memref<16xi32, #tpu.memory_space<smem>>
      %c0_i32_55 = arith.constant 0 : i32
      %115 = arith.addi %c0_i32_55, %c4_i32 : i32
      %c0_i32_56 = arith.constant 0 : i32
      %c0_i32_57 = arith.constant 0 : i32
      %116 = tpu.memref_slice %arg4[%114, %c0_i32_57] : memref<64x128xi32, #tpu.memory_space<any>> -> memref<1x128xi32, #tpu.memory_space<any>>
      %c0_i32_58 = arith.constant 0 : i32
      %117 = tpu.memref_slice %arg10[%115, %c0_i32_58] : memref<16x128xi32, #tpu.memory_space<vmem>> -> memref<1x128xi32, #tpu.memory_space<vmem>>
      %118 = tpu.memref_slice %arg11[%c0_i32_56] : memref<2x!tpu.dma_semaphore, #tpu.memory_space<semaphore_mem>> -> memref<1x!tpu.dma_semaphore, #tpu.memory_space<semaphore_mem>>
      %119 = tpu.memref_squeeze %118 : memref<1x!tpu.dma_semaphore, #tpu.memory_space<semaphore_mem>> -> memref<!tpu.dma_semaphore, #tpu.memory_space<semaphore_mem>>
      tpu.enqueue_dma source(%116 : memref<1x128xi32, #tpu.memory_space<any>>) target(%117 : memref<1x128xi32, #tpu.memory_space<vmem>>) target_semaphore(%119 : memref<!tpu.dma_semaphore, #tpu.memory_space<semaphore_mem>>)
      %c5_i32 = arith.constant 5 : i32
      %c0_i32_59 = arith.constant 0 : i32
      %120 = arith.addi %c0_i32_59, %c5_i32 : i32
      %121 = arith.index_cast %120 : i32 to index
      %122 = memref.load %arg1[%121] : memref<16xi32, #tpu.memory_space<smem>>
      %c0_i32_60 = arith.constant 0 : i32
      %123 = arith.addi %c0_i32_60, %c5_i32 : i32
      %c0_i32_61 = arith.constant 0 : i32
      %c0_i32_62 = arith.constant 0 : i32
      %124 = tpu.memref_slice %arg4[%122, %c0_i32_62] : memref<64x128xi32, #tpu.memory_space<any>> -> memref<1x128xi32, #tpu.memory_space<any>>
      %c0_i32_63 = arith.constant 0 : i32
      %125 = tpu.memref_slice %arg10[%123, %c0_i32_63] : memref<16x128xi32, #tpu.memory_space<vmem>> -> memref<1x128xi32, #tpu.memory_space<vmem>>
      %126 = tpu.memref_slice %arg11[%c0_i32_61] : memref<2x!tpu.dma_semaphore, #tpu.memory_space<semaphore_mem>> -> memref<1x!tpu.dma_semaphore, #tpu.memory_space<semaphore_mem>>
      %127 = tpu.memref_squeeze %126 : memref<1x!tpu.dma_semaphore, #tpu.memory_space<semaphore_mem>> -> memref<!tpu.dma_semaphore, #tpu.memory_space<semaphore_mem>>
      tpu.enqueue_dma source(%124 : memref<1x128xi32, #tpu.memory_space<any>>) target(%125 : memref<1x128xi32, #tpu.memory_space<vmem>>) target_semaphore(%127 : memref<!tpu.dma_semaphore, #tpu.memory_space<semaphore_mem>>)
      %c6_i32 = arith.constant 6 : i32
      %c0_i32_64 = arith.constant 0 : i32
      %128 = arith.addi %c0_i32_64, %c6_i32 : i32
      %129 = arith.index_cast %128 : i32 to index
      %130 = memref.load %arg1[%129] : memref<16xi32, #tpu.memory_space<smem>>
      %c0_i32_65 = arith.constant 0 : i32
      %131 = arith.addi %c0_i32_65, %c6_i32 : i32
      %c0_i32_66 = arith.constant 0 : i32
      %c0_i32_67 = arith.constant 0 : i32
      %132 = tpu.memref_slice %arg4[%130, %c0_i32_67] : memref<64x128xi32, #tpu.memory_space<any>> -> memref<1x128xi32, #tpu.memory_space<any>>
      %c0_i32_68 = arith.constant 0 : i32
      %133 = tpu.memref_slice %arg10[%131, %c0_i32_68] : memref<16x128xi32, #tpu.memory_space<vmem>> -> memref<1x128xi32, #tpu.memory_space<vmem>>
      %134 = tpu.memref_slice %arg11[%c0_i32_66] : memref<2x!tpu.dma_semaphore, #tpu.memory_space<semaphore_mem>> -> memref<1x!tpu.dma_semaphore, #tpu.memory_space<semaphore_mem>>
      %135 = tpu.memref_squeeze %134 : memref<1x!tpu.dma_semaphore, #tpu.memory_space<semaphore_mem>> -> memref<!tpu.dma_semaphore, #tpu.memory_space<semaphore_mem>>
      tpu.enqueue_dma source(%132 : memref<1x128xi32, #tpu.memory_space<any>>) target(%133 : memref<1x128xi32, #tpu.memory_space<vmem>>) target_semaphore(%135 : memref<!tpu.dma_semaphore, #tpu.memory_space<semaphore_mem>>)
      %c7_i32 = arith.constant 7 : i32
      %c0_i32_69 = arith.constant 0 : i32
      %136 = arith.addi %c0_i32_69, %c7_i32 : i32
      %137 = arith.index_cast %136 : i32 to index
      %138 = memref.load %arg1[%137] : memref<16xi32, #tpu.memory_space<smem>>
      %c0_i32_70 = arith.constant 0 : i32
      %139 = arith.addi %c0_i32_70, %c7_i32 : i32
      %c0_i32_71 = arith.constant 0 : i32
      %c0_i32_72 = arith.constant 0 : i32
      %140 = tpu.memref_slice %arg4[%138, %c0_i32_72] : memref<64x128xi32, #tpu.memory_space<any>> -> memref<1x128xi32, #tpu.memory_space<any>>
      %c0_i32_73 = arith.constant 0 : i32
      %141 = tpu.memref_slice %arg10[%139, %c0_i32_73] : memref<16x128xi32, #tpu.memory_space<vmem>> -> memref<1x128xi32, #tpu.memory_space<vmem>>
      %142 = tpu.memref_slice %arg11[%c0_i32_71] : memref<2x!tpu.dma_semaphore, #tpu.memory_space<semaphore_mem>> -> memref<1x!tpu.dma_semaphore, #tpu.memory_space<semaphore_mem>>
      %143 = tpu.memref_squeeze %142 : memref<1x!tpu.dma_semaphore, #tpu.memory_space<semaphore_mem>> -> memref<!tpu.dma_semaphore, #tpu.memory_space<semaphore_mem>>
      tpu.enqueue_dma source(%140 : memref<1x128xi32, #tpu.memory_space<any>>) target(%141 : memref<1x128xi32, #tpu.memory_space<vmem>>) target_semaphore(%143 : memref<!tpu.dma_semaphore, #tpu.memory_space<semaphore_mem>>)
      %c8_i32_74 = arith.constant 8 : i32
    } else {
    }
    %c1_i32_5 = arith.constant 1 : i32
    %13 = arith.addi %arg0, %c1_i32_5 : i32
    %c2_i32_6 = arith.constant 2 : i32
    %14 = arith.cmpi slt, %13, %c2_i32_6 : i32
    %15 = arith.extui %14 : i1 to i32
    %c0_i32_7 = arith.constant 0 : i32
    %16 = arith.cmpi ne, %15, %c0_i32_7 : i32
    scf.if %16 {
      %c1_i32_31 = arith.constant 1 : i32
      %80 = arith.addi %arg0, %c1_i32_31 : i32
      %c1_i32_32 = arith.constant 1 : i32
      %81 = arith.addi %arg0, %c1_i32_32 : i32
      %c2_i32_33 = arith.constant 2 : i32
      %c0_i32_34 = arith.constant 0 : i32
      %82 = arith.cmpi eq, %c2_i32_33, %c0_i32_34 : i32
      %c1_i32_35 = arith.constant 1 : i32
      %83 = arith.select %82, %c1_i32_35, %c2_i32_33 : i32
      %84 = arith.remsi %81, %83 : i32
      %c0_i32_36 = arith.constant 0 : i32
      %85 = arith.cmpi ne, %84, %c0_i32_36 : i32
      %c0_i32_37 = arith.constant 0 : i32
      %86 = arith.cmpi slt, %84, %c0_i32_37 : i32
      %c0_i32_38 = arith.constant 0 : i32
      %87 = arith.cmpi slt, %83, %c0_i32_38 : i32
      %88 = arith.xori %86, %87 : i1
      %89 = arith.andi %88, %85 : i1
      %90 = arith.addi %84, %83 : i32
      %91 = arith.select %89, %90, %84 : i32
      %c8_i32_39 = arith.constant 8 : i32
      %92 = arith.muli %80, %c8_i32_39 : i32
      %c8_i32_40 = arith.constant 8 : i32
      %93 = arith.muli %91, %c8_i32_40 : i32
      %c0_i32_41 = arith.constant 0 : i32
      %94 = arith.addi %92, %c0_i32_41 : i32
      %95 = arith.index_cast %94 : i32 to index
      %96 = memref.load %arg1[%95] : memref<16xi32, #tpu.memory_space<smem>>
      %97 = arith.addi %93, %c0_i32_41 : i32
      %c0_i32_42 = arith.constant 0 : i32
      %98 = tpu.memref_slice %arg4[%96, %c0_i32_42] : memref<64x128xi32, #tpu.memory_space<any>> -> memref<1x128xi32, #tpu.memory_space<any>>
      %c0_i32_43 = arith.constant 0 : i32
      %99 = tpu.memref_slice %arg10[%97, %c0_i32_43] : memref<16x128xi32, #tpu.memory_space<vmem>> -> memref<1x128xi32, #tpu.memory_space<vmem>>
      %100 = tpu.memref_slice %arg11[%91] : memref<2x!tpu.dma_semaphore, #tpu.memory_space<semaphore_mem>> -> memref<1x!tpu.dma_semaphore, #tpu.memory_space<semaphore_mem>>
      %101 = tpu.memref_squeeze %100 : memref<1x!tpu.dma_semaphore, #tpu.memory_space<semaphore_mem>> -> memref<!tpu.dma_semaphore, #tpu.memory_space<semaphore_mem>>
      tpu.enqueue_dma source(%98 : memref<1x128xi32, #tpu.memory_space<any>>) target(%99 : memref<1x128xi32, #tpu.memory_space<vmem>>) target_semaphore(%101 : memref<!tpu.dma_semaphore, #tpu.memory_space<semaphore_mem>>)
      %c1_i32_44 = arith.constant 1 : i32
      %102 = arith.addi %92, %c1_i32_44 : i32
      %103 = arith.index_cast %102 : i32 to index
      %104 = memref.load %arg1[%103] : memref<16xi32, #tpu.memory_space<smem>>
      %105 = arith.addi %93, %c1_i32_44 : i32
      %c0_i32_45 = arith.constant 0 : i32
      %106 = tpu.memref_slice %arg4[%104, %c0_i32_45] : memref<64x128xi32, #tpu.memory_space<any>> -> memref<1x128xi32, #tpu.memory_space<any>>
      %c0_i32_46 = arith.constant 0 : i32
      %107 = tpu.memref_slice %arg10[%105, %c0_i32_46] : memref<16x128xi32, #tpu.memory_space<vmem>> -> memref<1x128xi32, #tpu.memory_space<vmem>>
      %108 = tpu.memref_slice %arg11[%91] : memref<2x!tpu.dma_semaphore, #tpu.memory_space<semaphore_mem>> -> memref<1x!tpu.dma_semaphore, #tpu.memory_space<semaphore_mem>>
      %109 = tpu.memref_squeeze %108 : memref<1x!tpu.dma_semaphore, #tpu.memory_space<semaphore_mem>> -> memref<!tpu.dma_semaphore, #tpu.memory_space<semaphore_mem>>
      tpu.enqueue_dma source(%106 : memref<1x128xi32, #tpu.memory_space<any>>) target(%107 : memref<1x128xi32, #tpu.memory_space<vmem>>) target_semaphore(%109 : memref<!tpu.dma_semaphore, #tpu.memory_space<semaphore_mem>>)
      %c2_i32_47 = arith.constant 2 : i32
      %110 = arith.addi %92, %c2_i32_47 : i32
      %111 = arith.index_cast %110 : i32 to index
      %112 = memref.load %arg1[%111] : memref<16xi32, #tpu.memory_space<smem>>
      %113 = arith.addi %93, %c2_i32_47 : i32
      %c0_i32_48 = arith.constant 0 : i32
      %114 = tpu.memref_slice %arg4[%112, %c0_i32_48] : memref<64x128xi32, #tpu.memory_space<any>> -> memref<1x128xi32, #tpu.memory_space<any>>
      %c0_i32_49 = arith.constant 0 : i32
      %115 = tpu.memref_slice %arg10[%113, %c0_i32_49] : memref<16x128xi32, #tpu.memory_space<vmem>> -> memref<1x128xi32, #tpu.memory_space<vmem>>
      %116 = tpu.memref_slice %arg11[%91] : memref<2x!tpu.dma_semaphore, #tpu.memory_space<semaphore_mem>> -> memref<1x!tpu.dma_semaphore, #tpu.memory_space<semaphore_mem>>
      %117 = tpu.memref_squeeze %116 : memref<1x!tpu.dma_semaphore, #tpu.memory_space<semaphore_mem>> -> memref<!tpu.dma_semaphore, #tpu.memory_space<semaphore_mem>>
      tpu.enqueue_dma source(%114 : memref<1x128xi32, #tpu.memory_space<any>>) target(%115 : memref<1x128xi32, #tpu.memory_space<vmem>>) target_semaphore(%117 : memref<!tpu.dma_semaphore, #tpu.memory_space<semaphore_mem>>)
      %c3_i32 = arith.constant 3 : i32
      %118 = arith.addi %92, %c3_i32 : i32
      %119 = arith.index_cast %118 : i32 to index
      %120 = memref.load %arg1[%119] : memref<16xi32, #tpu.memory_space<smem>>
      %121 = arith.addi %93, %c3_i32 : i32
      %c0_i32_50 = arith.constant 0 : i32
      %122 = tpu.memref_slice %arg4[%120, %c0_i32_50] : memref<64x128xi32, #tpu.memory_space<any>> -> memref<1x128xi32, #tpu.memory_space<any>>
      %c0_i32_51 = arith.constant 0 : i32
      %123 = tpu.memref_slice %arg10[%121, %c0_i32_51] : memref<16x128xi32, #tpu.memory_space<vmem>> -> memref<1x128xi32, #tpu.memory_space<vmem>>
      %124 = tpu.memref_slice %arg11[%91] : memref<2x!tpu.dma_semaphore, #tpu.memory_space<semaphore_mem>> -> memref<1x!tpu.dma_semaphore, #tpu.memory_space<semaphore_mem>>
      %125 = tpu.memref_squeeze %124 : memref<1x!tpu.dma_semaphore, #tpu.memory_space<semaphore_mem>> -> memref<!tpu.dma_semaphore, #tpu.memory_space<semaphore_mem>>
      tpu.enqueue_dma source(%122 : memref<1x128xi32, #tpu.memory_space<any>>) target(%123 : memref<1x128xi32, #tpu.memory_space<vmem>>) target_semaphore(%125 : memref<!tpu.dma_semaphore, #tpu.memory_space<semaphore_mem>>)
      %c4_i32 = arith.constant 4 : i32
      %126 = arith.addi %92, %c4_i32 : i32
      %127 = arith.index_cast %126 : i32 to index
      %128 = memref.load %arg1[%127] : memref<16xi32, #tpu.memory_space<smem>>
      %129 = arith.addi %93, %c4_i32 : i32
      %c0_i32_52 = arith.constant 0 : i32
      %130 = tpu.memref_slice %arg4[%128, %c0_i32_52] : memref<64x128xi32, #tpu.memory_space<any>> -> memref<1x128xi32, #tpu.memory_space<any>>
      %c0_i32_53 = arith.constant 0 : i32
      %131 = tpu.memref_slice %arg10[%129, %c0_i32_53] : memref<16x128xi32, #tpu.memory_space<vmem>> -> memref<1x128xi32, #tpu.memory_space<vmem>>
      %132 = tpu.memref_slice %arg11[%91] : memref<2x!tpu.dma_semaphore, #tpu.memory_space<semaphore_mem>> -> memref<1x!tpu.dma_semaphore, #tpu.memory_space<semaphore_mem>>
      %133 = tpu.memref_squeeze %132 : memref<1x!tpu.dma_semaphore, #tpu.memory_space<semaphore_mem>> -> memref<!tpu.dma_semaphore, #tpu.memory_space<semaphore_mem>>
      tpu.enqueue_dma source(%130 : memref<1x128xi32, #tpu.memory_space<any>>) target(%131 : memref<1x128xi32, #tpu.memory_space<vmem>>) target_semaphore(%133 : memref<!tpu.dma_semaphore, #tpu.memory_space<semaphore_mem>>)
      %c5_i32 = arith.constant 5 : i32
      %134 = arith.addi %92, %c5_i32 : i32
      %135 = arith.index_cast %134 : i32 to index
      %136 = memref.load %arg1[%135] : memref<16xi32, #tpu.memory_space<smem>>
      %137 = arith.addi %93, %c5_i32 : i32
      %c0_i32_54 = arith.constant 0 : i32
      %138 = tpu.memref_slice %arg4[%136, %c0_i32_54] : memref<64x128xi32, #tpu.memory_space<any>> -> memref<1x128xi32, #tpu.memory_space<any>>
      %c0_i32_55 = arith.constant 0 : i32
      %139 = tpu.memref_slice %arg10[%137, %c0_i32_55] : memref<16x128xi32, #tpu.memory_space<vmem>> -> memref<1x128xi32, #tpu.memory_space<vmem>>
      %140 = tpu.memref_slice %arg11[%91] : memref<2x!tpu.dma_semaphore, #tpu.memory_space<semaphore_mem>> -> memref<1x!tpu.dma_semaphore, #tpu.memory_space<semaphore_mem>>
      %141 = tpu.memref_squeeze %140 : memref<1x!tpu.dma_semaphore, #tpu.memory_space<semaphore_mem>> -> memref<!tpu.dma_semaphore, #tpu.memory_space<semaphore_mem>>
      tpu.enqueue_dma source(%138 : memref<1x128xi32, #tpu.memory_space<any>>) target(%139 : memref<1x128xi32, #tpu.memory_space<vmem>>) target_semaphore(%141 : memref<!tpu.dma_semaphore, #tpu.memory_space<semaphore_mem>>)
      %c6_i32 = arith.constant 6 : i32
      %142 = arith.addi %92, %c6_i32 : i32
      %143 = arith.index_cast %142 : i32 to index
      %144 = memref.load %arg1[%143] : memref<16xi32, #tpu.memory_space<smem>>
      %145 = arith.addi %93, %c6_i32 : i32
      %c0_i32_56 = arith.constant 0 : i32
      %146 = tpu.memref_slice %arg4[%144, %c0_i32_56] : memref<64x128xi32, #tpu.memory_space<any>> -> memref<1x128xi32, #tpu.memory_space<any>>
      %c0_i32_57 = arith.constant 0 : i32
      %147 = tpu.memref_slice %arg10[%145, %c0_i32_57] : memref<16x128xi32, #tpu.memory_space<vmem>> -> memref<1x128xi32, #tpu.memory_space<vmem>>
      %148 = tpu.memref_slice %arg11[%91] : memref<2x!tpu.dma_semaphore, #tpu.memory_space<semaphore_mem>> -> memref<1x!tpu.dma_semaphore, #tpu.memory_space<semaphore_mem>>
      %149 = tpu.memref_squeeze %148 : memref<1x!tpu.dma_semaphore, #tpu.memory_space<semaphore_mem>> -> memref<!tpu.dma_semaphore, #tpu.memory_space<semaphore_mem>>
      tpu.enqueue_dma source(%146 : memref<1x128xi32, #tpu.memory_space<any>>) target(%147 : memref<1x128xi32, #tpu.memory_space<vmem>>) target_semaphore(%149 : memref<!tpu.dma_semaphore, #tpu.memory_space<semaphore_mem>>)
      %c7_i32 = arith.constant 7 : i32
      %150 = arith.addi %92, %c7_i32 : i32
      %151 = arith.index_cast %150 : i32 to index
      %152 = memref.load %arg1[%151] : memref<16xi32, #tpu.memory_space<smem>>
      %153 = arith.addi %93, %c7_i32 : i32
      %c0_i32_58 = arith.constant 0 : i32
      %154 = tpu.memref_slice %arg4[%152, %c0_i32_58] : memref<64x128xi32, #tpu.memory_space<any>> -> memref<1x128xi32, #tpu.memory_space<any>>
      %c0_i32_59 = arith.constant 0 : i32
      %155 = tpu.memref_slice %arg10[%153, %c0_i32_59] : memref<16x128xi32, #tpu.memory_space<vmem>> -> memref<1x128xi32, #tpu.memory_space<vmem>>
      %156 = tpu.memref_slice %arg11[%91] : memref<2x!tpu.dma_semaphore, #tpu.memory_space<semaphore_mem>> -> memref<1x!tpu.dma_semaphore, #tpu.memory_space<semaphore_mem>>
      %157 = tpu.memref_squeeze %156 : memref<1x!tpu.dma_semaphore, #tpu.memory_space<semaphore_mem>> -> memref<!tpu.dma_semaphore, #tpu.memory_space<semaphore_mem>>
      tpu.enqueue_dma source(%154 : memref<1x128xi32, #tpu.memory_space<any>>) target(%155 : memref<1x128xi32, #tpu.memory_space<vmem>>) target_semaphore(%157 : memref<!tpu.dma_semaphore, #tpu.memory_space<semaphore_mem>>)
      %c8_i32_60 = arith.constant 8 : i32
    } else {
    }
    %c0 = arith.constant 0 : index
    %c0_8 = arith.constant 0 : index
    %17 = vector.load %arg2[%c0, %c0_8] : memref<8x1xi32, #tpu.memory_space<vmem>>, vector<8x1xi32>
    %18 = tpu.iota {dimensions = array<i32: 1>} : vector<8x64xi32>
    %19 = vector.broadcast %17 : vector<8x1xi32> to vector<8x64xi32>
    %20 = arith.cmpi eq, %18, %19 : vector<8x64xi32>
    %21 = arith.extui %20 : vector<8x64xi1> to vector<8x64xi32>
    %22 = arith.sitofp %21 : vector<8x64xi32> to vector<8x64xf32>
    %23 = arith.truncf %22 : vector<8x64xf32> to vector<8x64xbf16>
    %c0_9 = arith.constant 0 : index
    %c0_10 = arith.constant 0 : index
    %24 = vector.load %arg5[%c0_9, %c0_10] : memref<64x256xbf16, #tpu.memory_space<vmem>>, vector<64x256xbf16>
    %cst = arith.constant dense<0.000000e+00> : vector<8x256xf32>
    %25 = tpu.matmul %23, %24, %cst {dimension_numbers = #tpu.dot_dimension_numbers<[1], [0], [0], [1], [0, 0, 1, 1], [], []>} : vector<8x64xbf16>, vector<64x256xbf16>, vector<8x256xf32> -> vector<8x256xf32>
    %c0_11 = arith.constant 0 : index
    %c0_12 = arith.constant 0 : index
    %26 = vector.load %arg3[%c0_11, %c0_12] : memref<8x1xi32, #tpu.memory_space<vmem>>, vector<8x1xi32>
    %c0_13 = arith.constant 0 : index
    %c0_14 = arith.constant 0 : index
    %27 = vector.load %arg6[%c0_13, %c0_14] : memref<2x256xf32, #tpu.memory_space<vmem>>, vector<1x256xf32>
    %28 = vector.shape_cast %27 : vector<1x256xf32> to vector<1x256xf32>
    %29 = vector.broadcast %28 : vector<1x256xf32> to vector<8x256xf32>
    %c1_i32_15 = arith.constant 1 : i32
    %30 = vector.broadcast %c1_i32_15 : i32 to vector<8x1xi32>
    %31 = arith.cmpi eq, %26, %30 : vector<8x1xi32>
    %c1 = arith.constant 1 : index
    %c0_16 = arith.constant 0 : index
    %32 = vector.load %arg6[%c1, %c0_16] : memref<2x256xf32, #tpu.memory_space<vmem>>, vector<1x256xf32>
    %33 = vector.shape_cast %31 : vector<8x1xi1> to vector<8x1xi1>
    %34 = vector.broadcast %33 : vector<8x1xi1> to vector<8x256xi1>
    %35 = vector.shape_cast %32 : vector<1x256xf32> to vector<1x256xf32>
    %36 = vector.broadcast %35 : vector<1x256xf32> to vector<8x256xf32>
    %37 = arith.select %34, %36, %29 : vector<8x256xi1>, vector<8x256xf32>
    %c8_i32 = arith.constant 8 : i32
    %38 = arith.muli %9, %c8_i32 : i32
    %39 = tpu.assume_multiple %38, 8 : i32
    %c0_i32_17 = arith.constant 0 : i32
    %40 = tpu.memref_slice %arg10[%39, %c0_i32_17] : memref<16x128xi32, #tpu.memory_space<vmem>> -> memref<8x128xi32, #tpu.memory_space<vmem>>
    %c0_i32_18 = arith.constant 0 : i32
    %41 = tpu.memref_slice %arg10[%39, %c0_i32_18] : memref<16x128xi32, #tpu.memory_space<vmem>> -> memref<8x128xi32, #tpu.memory_space<vmem>>
    %42 = tpu.memref_slice %arg11[%9] : memref<2x!tpu.dma_semaphore, #tpu.memory_space<semaphore_mem>> -> memref<1x!tpu.dma_semaphore, #tpu.memory_space<semaphore_mem>>
    %43 = tpu.memref_squeeze %42 : memref<1x!tpu.dma_semaphore, #tpu.memory_space<semaphore_mem>> -> memref<!tpu.dma_semaphore, #tpu.memory_space<semaphore_mem>>
    tpu.wait_dma2 semaphore(%43 : memref<!tpu.dma_semaphore, #tpu.memory_space<semaphore_mem>>) src(%40 : memref<8x128xi32, #tpu.memory_space<vmem>>) dst(%41 : memref<8x128xi32, #tpu.memory_space<vmem>>)
    %44 = arith.index_cast %39 : i32 to index
    %c0_19 = arith.constant 0 : index
    %45 = vector.load %arg10[%44, %c0_19] : memref<16x128xi32, #tpu.memory_space<vmem>>, vector<8x128xi32>
    %c16_i32 = arith.constant 16 : i32
    %46 = vector.broadcast %c16_i32 : i32 to vector<8x128xi32>
    %47 = arith.shli %45, %46 : vector<8x128xi32>
    %48 = tpu.bitcast %47 : vector<8x128xi32> -> vector<8x128xf32>
    %c-65536_i32 = arith.constant -65536 : i32
    %49 = vector.broadcast %c-65536_i32 : i32 to vector<8x128xi32>
    %50 = arith.andi %45, %49 : vector<8x128xi32>
    %51 = tpu.bitcast %50 : vector<8x128xi32> -> vector<8x128xf32>
    %52 = tpu.concatenate %48, %51 in 1 : vector<8x128xf32>, vector<8x128xf32> -> vector<8x256xf32>
    %53 = arith.addf %52, %25 : vector<8x256xf32>
    %54 = arith.addf %53, %37 : vector<8x256xf32>
    %cst_20 = arith.constant dense<0.000000e+00> : vector<8xf32>
    %55 = vector.multi_reduction <add>, %54, %cst_20 [1] : vector<8x256xf32> to vector<8xf32>
    %56 = vector.shape_cast %55 : vector<8xf32> to vector<8x1xf32>
    %cst_21 = arith.constant 2.560000e+02 : f32
    %57 = vector.broadcast %cst_21 : f32 to vector<8x1xf32>
    %58 = arith.divf %56, %57 : vector<8x1xf32>
    %59 = vector.broadcast %58 : vector<8x1xf32> to vector<8x256xf32>
    %60 = arith.subf %54, %59 : vector<8x256xf32>
    %61 = arith.mulf %60, %60 : vector<8x256xf32>
    %cst_22 = arith.constant dense<0.000000e+00> : vector<8xf32>
    %62 = vector.multi_reduction <add>, %61, %cst_22 [1] : vector<8x256xf32> to vector<8xf32>
    %63 = vector.shape_cast %62 : vector<8xf32> to vector<8x1xf32>
    %cst_23 = arith.constant 2.560000e+02 : f32
    %64 = vector.broadcast %cst_23 : f32 to vector<8x1xf32>
    %65 = arith.divf %63, %64 : vector<8x1xf32>
    %66 = vector.broadcast %58 : vector<8x1xf32> to vector<8x256xf32>
    %67 = arith.subf %54, %66 : vector<8x256xf32>
    %cst_24 = arith.constant 9.99999974E-6 : f32
    %68 = vector.broadcast %cst_24 : f32 to vector<8x1xf32>
    %69 = arith.addf %65, %68 : vector<8x1xf32>
    %70 = math.rsqrt %69 : vector<8x1xf32>
    %71 = vector.broadcast %70 : vector<8x1xf32> to vector<8x256xf32>
    %72 = arith.mulf %67, %71 : vector<8x256xf32>
    %c0_25 = arith.constant 0 : index
    %c0_26 = arith.constant 0 : index
    %73 = vector.load %arg7[%c0_25, %c0_26] : memref<1x256xf32, #tpu.memory_space<vmem>>, vector<1x256xf32>
    %74 = vector.broadcast %73 : vector<1x256xf32> to vector<8x256xf32>
    %75 = arith.mulf %72, %74 : vector<8x256xf32>
    %c0_27 = arith.constant 0 : index
    %c0_28 = arith.constant 0 : index
    %76 = vector.load %arg8[%c0_27, %c0_28] : memref<1x256xf32, #tpu.memory_space<vmem>>, vector<1x256xf32>
    %77 = vector.broadcast %76 : vector<1x256xf32> to vector<8x256xf32>
    %78 = arith.addf %75, %77 : vector<8x256xf32>
    %c0_29 = arith.constant 0 : index
    %c0_30 = arith.constant 0 : index
    %79 = vector.load %arg9[%c0_29, %c0_30] : memref<8x256xf32, #tpu.memory_space<vmem>>, vector<8x256xf32>
    tpu.vector_store %arg9[%c0_29, %c0_30], %78 {strides = array<i32>} : memref<8x256xf32, #tpu.memory_space<vmem>>, vector<8x256xf32>,
    return
  }
  func.func @transform_0(%arg0: i32, %arg1: memref<16xi32, #tpu.memory_space<smem>>) -> (i32, i32) {
    %c0_i32 = arith.constant 0 : i32
    %c0_i32_0 = arith.constant 0 : i32
    return %arg0, %c0_i32 : i32, i32
  }
  func.func @transform_1(%arg0: i32, %arg1: memref<16xi32, #tpu.memory_space<smem>>) -> (i32, i32) {
    %c0_i32 = arith.constant 0 : i32
    %c0_i32_0 = arith.constant 0 : i32
    return %arg0, %c0_i32 : i32, i32
  }
  func.func @transform_3(%arg0: i32, %arg1: memref<16xi32, #tpu.memory_space<smem>>) -> (i32, i32) {
    %c0_i32 = arith.constant 0 : i32
    %c0_i32_0 = arith.constant 0 : i32
    %c0_i32_1 = arith.constant 0 : i32
    return %c0_i32, %c0_i32_0 : i32, i32
  }
  func.func @transform_4(%arg0: i32, %arg1: memref<16xi32, #tpu.memory_space<smem>>) -> (i32, i32) {
    %c0_i32 = arith.constant 0 : i32
    %c0_i32_0 = arith.constant 0 : i32
    %c0_i32_1 = arith.constant 0 : i32
    return %c0_i32, %c0_i32_0 : i32, i32
  }
  func.func @transform_5(%arg0: i32, %arg1: memref<16xi32, #tpu.memory_space<smem>>) -> (i32, i32) {
    %c0_i32 = arith.constant 0 : i32
    %c0_i32_0 = arith.constant 0 : i32
    %c0_i32_1 = arith.constant 0 : i32
    return %c0_i32, %c0_i32_0 : i32, i32
  }
  func.func @transform_6(%arg0: i32, %arg1: memref<16xi32, #tpu.memory_space<smem>>) -> (i32, i32) {
    %c0_i32 = arith.constant 0 : i32
    %c0_i32_0 = arith.constant 0 : i32
    %c0_i32_1 = arith.constant 0 : i32
    return %c0_i32, %c0_i32_0 : i32, i32
  }
  func.func @transform_7(%arg0: i32, %arg1: memref<16xi32, #tpu.memory_space<smem>>) -> (i32, i32) {
    %c0_i32 = arith.constant 0 : i32
    %c0_i32_0 = arith.constant 0 : i32
    return %arg0, %c0_i32 : i32, i32
  }
}

</mosaic_0001>

<llo_original>
// kernel: tpu_custom_call.1
$region0: #{tpu_custom_call.1}
  #allocation0 [shape = 'u32[]', space=smem, size = 0x4, offset = 0x4, fixed_abs, tag = 'smem constant byte address 0x4 - core index']
  #allocation1 [shape = 'u32[144,128]{1,0:T(1,128)}', space=vmem, size = 0x12000, scoped, tag = 'internal scratch']
  #allocation2 [shape = 's32[16,128]{1,0:T(8,128)}', space=vmem, size = 0x2000, scoped, tag = 'scratch operand']
  #allocation3 [shape = 's32[2]{0}', space=sflag, size = 0x8, scoped, tag = 'scratch operand']
  #allocation4 [shape = 's32[1]{0}', space=sflag, size = 0x4, scoped, tag = 'scoped memory for tpu_custom_call.1']
  #allocation5 [shape = 'u8[512]{0}', space=smem, size = 0x200, scoped, tag = 'prefetched SMEM operand 0']
  #allocation10 [shape = 's32[]', space=sflag, size = 0x4, offset = 0, fixed_abs, tag = 'sflag constant byte address 0x0 - dummy sync flag']
  #allocation11 [shape = 's32[]', space=sflag, size = 0x4, offset = 0, fixed_abs, tag = 'sflag constant byte address 0x0 - dummy sync flag']
  #allocation12 [shape = 'u32[]', space=smem, size = 0x4, offset = 0x44, fixed_abs, tag = 'smem constant byte address 0x44 - assertion arg 0']
  #allocation13 [shape = 'u32[]', space=smem, size = 0x4, offset = 0x48, fixed_abs, tag = 'smem constant byte address 0x48 - assertion arg 1']
  #allocation14 [shape = 's32[]', space=sflag, size = 0x4, offset = 0, fixed_abs, tag = 'sflag constant byte address 0x0 - dummy sync flag']
  #allocation15 [shape = 's32[]', space=sflag, size = 0x4, offset = 0, fixed_abs, tag = 'sflag constant byte address 0x0 - dummy sync flag']
  #allocation16 [shape = 's32[]', space=sflag, size = 0x4, offset = 0, fixed_abs, tag = 'sflag constant byte address 0x0 - dummy sync flag']
  #allocation17 [shape = 's32[]', space=sflag, size = 0x4, offset = 0, fixed_abs, tag = 'sflag constant byte address 0x0 - dummy sync flag']
  #allocation18 [shape = 's32[]', space=sflag, size = 0x4, offset = 0, fixed_abs, tag = 'sflag constant byte address 0x0 - dummy sync flag']
  #allocation19 [shape = 's32[]', space=sflag, size = 0x4, offset = 0, fixed_abs, tag = 'sflag constant byte address 0x0 - dummy sync flag']
  #allocation20 [shape = 's32[]', space=sflag, size = 0x4, offset = 0, fixed_abs, tag = 'sflag constant byte address 0x0 - dummy sync flag']
  #allocation21 [shape = 's32[]', space=sflag, size = 0x4, offset = 0, fixed_abs, tag = 'sflag constant byte address 0x0 - dummy sync flag']
  #allocation22 [shape = 's32[]', space=sflag, size = 0x4, offset = 0, fixed_abs, tag = 'sflag constant byte address 0x0 - dummy sync flag']
  #allocation23 [shape = 's32[]', space=sflag, size = 0x4, offset = 0, fixed_abs, tag = 'sflag constant byte address 0x0 - dummy sync flag']
  #allocation24 [shape = 's32[]', space=sflag, size = 0x4, offset = 0, fixed_abs, tag = 'sflag constant byte address 0x0 - dummy sync flag']
  #allocation25 [shape = 's32[]', space=sflag, size = 0x4, offset = 0, fixed_abs, tag = 'sflag constant byte address 0x0 - dummy sync flag']
  #allocation26 [shape = 's32[]', space=sflag, size = 0x4, offset = 0, fixed_abs, tag = 'sflag constant byte address 0x0 - dummy sync flag']
  #allocation27 [shape = 's32[]', space=sflag, size = 0x4, offset = 0, fixed_abs, tag = 'sflag constant byte address 0x0 - dummy sync flag']
  #allocation28 [shape = 's32[]', space=sflag, size = 0x4, offset = 0, fixed_abs, tag = 'sflag constant byte address 0x0 - dummy sync flag']
  #allocation29 [shape = 's32[]', space=sflag, size = 0x4, offset = 0, fixed_abs, tag = 'sflag constant byte address 0x0 - dummy sync flag']
  #allocation30 [shape = 's32[]', space=sflag, size = 0x4, offset = 0, fixed_abs, tag = 'sflag constant byte address 0x0 - dummy sync flag']
  #allocation31 [shape = 's32[]', space=sflag, size = 0x4, offset = 0, fixed_abs, tag = 'sflag constant byte address 0x0 - dummy sync flag']
  #allocation32 [shape = 's32[]', space=sflag, size = 0x4, offset = 0, fixed_abs, tag = 'sflag constant byte address 0x0 - dummy sync flag']
  #allocation33 [shape = 's32[]', space=sflag, size = 0x4, offset = 0, fixed_abs, tag = 'sflag constant byte address 0x0 - dummy sync flag']
  #allocation34 [shape = 's32[]', space=sflag, size = 0x4, offset = 0, fixed_abs, tag = 'sflag constant byte address 0x0 - dummy sync flag']
  #allocation35 [shape = 's32[]', space=sflag, size = 0x4, offset = 0, fixed_abs, tag = 'sflag constant byte address 0x0 - dummy sync flag']
  #allocation36 [shape = 's32[]', space=sflag, size = 0x4, offset = 0, fixed_abs, tag = 'sflag constant byte address 0x0 - dummy sync flag']
  #allocation37 [shape = 's32[]', space=sflag, size = 0x4, offset = 0, fixed_abs, tag = 'sflag constant byte address 0x0 - dummy sync flag']
  #allocation38 [shape = 's32[]', space=sflag, size = 0x4, offset = 0, fixed_abs, tag = 'sflag constant byte address 0x0 - dummy sync flag']
  #allocation39 [shape = 's32[]', space=sflag, size = 0x4, offset = 0, fixed_abs, tag = 'sflag constant byte address 0x0 - dummy sync flag']
  #allocation40 [shape = 's32[]', space=sflag, size = 0x4, offset = 0, fixed_abs, tag = 'sflag constant byte address 0x0 - dummy sync flag']
  #allocation41 [shape = 's32[]', space=sflag, size = 0x4, offset = 0, fixed_abs, tag = 'sflag constant byte address 0x0 - dummy sync flag']
  #allocation42 [shape = 's32[]', space=sflag, size = 0x4, offset = 0, fixed_abs, tag = 'sflag constant byte address 0x0 - dummy sync flag']
  #allocation43 [shape = 's32[]', space=sflag, size = 0x4, offset = 0, fixed_abs, tag = 'sflag constant byte address 0x0 - dummy sync flag']
  %s0 = inlined_call_operand.vmem [shape: s32[16], index: 0, kind: input, shape index: {}]
  %s1 = inlined_call_operand.vmem [shape: s32[16,1], index: 1, kind: input, shape index: {}]
  %s2 = inlined_call_operand.vmem [shape: s32[16,1], index: 2, kind: input, shape index: {}]
  %s3 = inlined_call_operand.hbm [shape: u32[64,128], index: 3, kind: input, shape index: {}]
  %s4 = inlined_call_operand.hbm [shape: bf16[64,256], index: 4, kind: input, shape index: {}]
  %s5 = inlined_call_operand.vmem [shape: f32[2,256], index: 5, kind: input, shape index: {}]
  %s6 = inlined_call_operand.vmem [shape: f32[1,256], index: 6, kind: input, shape index: {}]
  %s7 = inlined_call_operand.vmem [shape: f32[1,256], index: 7, kind: input, shape index: {}]
  %s8 = inlined_call_operand.hbm [shape: f32[16,256], index: 8, kind: output, shape index: {}]
  %s9 = sld [smem:[#allocation0]]
  $region133: #{tpu_custom_call.1} parent=0
    _
  %s11 = ssub.s32 1, %s9
  %s12 = scalar_select 0, %s11, %s9
  %s13 = sshll.u32 %s0, 4
  %s14 = int_to_ptr.vmem [resolvable:$true] %s13
  %16 = dma.vmem_to_smem %s14, 16, [#allocation5], [#allocation4]
  %17 = dma.done [#allocation4], 16
  %18 = sfence
  $region1: #{tpu_custom_call.1} parent=0
    #allocation6 [shape = 'u8[32768]{0}', space=vmem, size = 0x8000, scoped, tag = 'input window, operand 4, single buffered']
    #allocation7 [shape = 's32[2]{0}', space=sflag, size = 0x8, scoped, tag = 'scoped memory for tpu_custom_call.1']
    #allocation8 [shape = 's32[2]{0}', space=sflag, size = 0x8, scoped, tag = 'scoped memory for tpu_custom_call.1']
    #allocation9 [shape = 'u8[16384]{0}', space=vmem, size = 0x4000, scoped, tag = 'output window, operand 0']
    %19 = vsyncpa [#allocation7], 0
    %20 = vsyncpa [#allocation8], 0
    %s21 = scalar_lea.sflag [#allocation8], 1
    %22 = vsyncpa %s21, 0
    loop: start=0, step=1, limit=4
    $region2: #{tpu_custom_call.1} parent=1 // loop_pre_header
      _
    $region3: #{tpu_custom_call.1} parent=1 // loop_header
      %s24 = sphi 0, %s28
      %p25 = scmp.ge.s32.totalorder %s24, 4
      %s34 = sphi 0, %s36
      %s37 = sphi 0, %s34
      %s38 = sphi 0, %s37
      %s54 = sphi 0, %s38
      %s60 = sphi 0, %s62
      %s63 = sphi 0, %s60
      %s64 = sphi 0, %s63
      %s80 = sphi 0, %s64
      %s84 = sphi 0, %s84
      %s86 = sphi 0, %s84
      %s87 = sphi 0, %s86
      %s101 = sphi 0, %s87
      %s105 = sphi 0, %s105
      %s107 = sphi 0, %s105
      %s108 = sphi 0, %s107
      %s122 = sphi 0, %s108
      %s126 = sphi 0, %s126
      %s128 = sphi 0, %s126
      %s129 = sphi 0, %s128
      %s143 = sphi 0, %s129
      %s147 = sphi 0, %s147
      %s149 = sphi 0, %s147
      %s150 = sphi 0, %s149
      %s164 = sphi 0, %s150
      %s170 = sphi 0, %s172
      %s173 = sphi 0, %s170
      %s174 = sphi 0, %s173
      %s190 = sphi 0, %s174
    $region4: #{tpu_custom_call.1} parent=1 // loop_header_branch
      %27 = sbr.rel (%p25) target = $region8
    $region5: #{tpu_custom_call.1} parent=1 // loop_body
      %s29 = ssub.s32 %s24, 1
      %s30 = ssub.s32 %s24, 2
      %s31 = sadd.s32 %s24, 1
      %s32 = ssub.s32 %s24, %s31
      %p33 = scmp.eq.s32.totalorder %s32, 0
      %s35 = sadd.s32 %s34, 1
      %s36 = scalar_select %p33, %s34, %s35
      %p39 = pneg %p33
      %p40 = scmp.eq.s32.totalorder %s24, 1
      %p41 = por %p39, %p40
      %p42 = scmp.ne.s32.totalorder %s34, %s37
      %p43 = scmp.eq.s32.totalorder %s24, 0
      %p44 = por %p42, %p43
      %p45 = scmp.ne.s32.totalorder %s34, %s37
      %p46 = scmp.eq.s32.totalorder %s29, 1
      %p47 = por %p45, %p46
      %p48 = scmp.ne.s32.totalorder %s37, %s38
      %p49 = scmp.eq.s32.totalorder %s29, 0
      %p50 = por %p48, %p49
      %p51 = scmp.ne.s32.totalorder %s37, %s38
      %p52 = scmp.eq.s32.totalorder %s30, 1
      %p53 = por %p51, %p52
      %p55 = scmp.ne.s32.totalorder %s38, %s54
      %p56 = scmp.eq.s32.totalorder %s30, 0
      %p57 = por %p55, %p56
      %s58 = ssub.s32 %s24, %s31
      %p59 = scmp.eq.s32.totalorder %s58, 0
      %s61 = sadd.s32 %s60, 1
      %s62 = scalar_select %p59, %s60, %s61
      %p65 = pneg %p59
      %p66 = scmp.eq.s32.totalorder %s24, 1
      %p67 = por %p65, %p66
      %p68 = scmp.ne.s32.totalorder %s60, %s63
      %p69 = scmp.eq.s32.totalorder %s24, 0
      %p70 = por %p68, %p69
      %p71 = scmp.ne.s32.totalorder %s60, %s63
      %p72 = scmp.eq.s32.totalorder %s29, 1
      %p73 = por %p71, %p72
      %p74 = scmp.ne.s32.totalorder %s63, %s64
      %p75 = scmp.eq.s32.totalorder %s29, 0
      %p76 = por %p74, %p75
      %p77 = scmp.ne.s32.totalorder %s63, %s64
      %p78 = scmp.eq.s32.totalorder %s30, 1
      %p79 = por %p77, %p78
      %p81 = scmp.ne.s32.totalorder %s64, %s80
      %p82 = scmp.eq.s32.totalorder %s30, 0
      %p83 = por %p81, %p82
      %s85 = sadd.s32 %s84, 1
      %p88 = scmp.eq.s32.totalorder %s24, 1
      %p89 = scmp.ne.s32.totalorder %s84, %s86
      %p90 = scmp.eq.s32.totalorder %s24, 0
      %p91 = por %p89, %p90
      %p92 = scmp.ne.s32.totalorder %s84, %s86
      %p93 = scmp.eq.s32.totalorder %s29, 1
      %p94 = por %p92, %p93
      %p95 = scmp.ne.s32.totalorder %s86, %s87
      %p96 = scmp.eq.s32.totalorder %s29, 0
      %p97 = por %p95, %p96
      %p98 = scmp.ne.s32.totalorder %s86, %s87
      %p99 = scmp.eq.s32.totalorder %s30, 1
      %p100 = por %p98, %p99
      %p102 = scmp.ne.s32.totalorder %s87, %s101
      %p103 = scmp.eq.s32.totalorder %s30, 0
      %p104 = por %p102, %p103
      %s106 = sadd.s32 %s105, 1
      %p109 = scmp.eq.s32.totalorder %s24, 1
      %p110 = scmp.ne.s32.totalorder %s105, %s107
      %p111 = scmp.eq.s32.totalorder %s24, 0
      %p112 = por %p110, %p111
      %p113 = scmp.ne.s32.totalorder %s105, %s107
      %p114 = scmp.eq.s32.totalorder %s29, 1
      %p115 = por %p113, %p114
      %p116 = scmp.ne.s32.totalorder %s107, %s108
      %p117 = scmp.eq.s32.totalorder %s29, 0
      %p118 = por %p116, %p117
      %p119 = scmp.ne.s32.totalorder %s107, %s108
      %p120 = scmp.eq.s32.totalorder %s30, 1
      %p121 = por %p119, %p120
      %p123 = scmp.ne.s32.totalorder %s108, %s122
      %p124 = scmp.eq.s32.totalorder %s30, 0
      %p125 = por %p123, %p124
      %s127 = sadd.s32 %s126, 1
      %p130 = scmp.eq.s32.totalorder %s24, 1
      %p131 = scmp.ne.s32.totalorder %s126, %s128
      %p132 = scmp.eq.s32.totalorder %s24, 0
      %p133 = por %p131, %p132
      %p134 = scmp.ne.s32.totalorder %s126, %s128
      %p135 = scmp.eq.s32.totalorder %s29, 1
      %p136 = por %p134, %p135
      %p137 = scmp.ne.s32.totalorder %s128, %s129
      %p138 = scmp.eq.s32.totalorder %s29, 0
      %p139 = por %p137, %p138
      %p140 = scmp.ne.s32.totalorder %s128, %s129
      %p141 = scmp.eq.s32.totalorder %s30, 1
      %p142 = por %p140, %p141
      %p144 = scmp.ne.s32.totalorder %s129, %s143
      %p145 = scmp.eq.s32.totalorder %s30, 0
      %p146 = por %p144, %p145
      %s148 = sadd.s32 %s147, 1
      %p151 = scmp.eq.s32.totalorder %s24, 1
      %p152 = scmp.ne.s32.totalorder %s147, %s149
      %p153 = scmp.eq.s32.totalorder %s24, 0
      %p154 = por %p152, %p153
      %p155 = scmp.ne.s32.totalorder %s147, %s149
      %p156 = scmp.eq.s32.totalorder %s29, 1
      %p157 = por %p155, %p156
      %p158 = scmp.ne.s32.totalorder %s149, %s150
      %p159 = scmp.eq.s32.totalorder %s29, 0
      %p160 = por %p158, %p159
      %p161 = scmp.ne.s32.totalorder %s149, %s150
      %p162 = scmp.eq.s32.totalorder %s30, 1
      %p163 = por %p161, %p162
      %p165 = scmp.ne.s32.totalorder %s150, %s164
      %p166 = scmp.eq.s32.totalorder %s30, 0
      %p167 = por %p165, %p166
      %s168 = ssub.s32 %s24, %s31
      %p169 = scmp.eq.s32.totalorder %s168, 0
      %s171 = sadd.s32 %s170, 1
      %s172 = scalar_select %p169, %s170, %s171
      %p175 = pneg %p169
      %p176 = scmp.eq.s32.totalorder %s24, 1
      %p177 = por %p175, %p176
      %p178 = scmp.ne.s32.totalorder %s170, %s173
      %p179 = scmp.eq.s32.totalorder %s24, 0
      %p180 = por %p178, %p179
      %p181 = scmp.ne.s32.totalorder %s170, %s173
      %p182 = scmp.eq.s32.totalorder %s29, 1
      %p183 = por %p181, %p182
      %p184 = scmp.ne.s32.totalorder %s173, %s174
      %p185 = scmp.eq.s32.totalorder %s29, 0
      %p186 = por %p184, %p185
      %p187 = scmp.ne.s32.totalorder %s173, %s174
      %p188 = scmp.eq.s32.totalorder %s30, 1
      %p189 = por %p187, %p188
      %p191 = scmp.ne.s32.totalorder %s174, %s190
      %p192 = scmp.eq.s32.totalorder %s30, 0
      %p193 = por %p191, %p192
      %p194 = scmp.le.s32.totalorder 1, %s24
      %p195 = scmp.lt.s32.totalorder %s24, 3
      %p196 = pnand %p194, %p195
      %p197 = pneg %p196
      // Predicated region
      $region9: #{tpu_custom_call.1} parent=5 // pred_check
        _
      $region10: #{tpu_custom_call.1} parent=5 // pred_check_branch
        %199 = sbr.rel (%p196) target = $region12
      $region11: #{tpu_custom_call.1} parent=5 // pred_region
        %s200 = ssub.s32 %s24, 1
        // Predicated region
        $region13: #{tpu_custom_call.1} parent=11 // pred_check
          %p201 = pneg %p97
        $region14: #{tpu_custom_call.1} parent=11 // pred_check_branch
          %203 = sbr.rel (%p201) target = $region16
        $region15: #{tpu_custom_call.1} parent=11 // pred_region
          %s205 = ssub.s32 1024, 1024
          %206 = vsyncadd [#allocation7], %s205
          %s207 = sshll.u32 [#allocation6], 4
          %s208 = int_to_ptr.vmem [resolvable:$true] %s207
          %213 = dma.hbm_to_vmem [thread:$0]  %s4, 1024, %s208, [#allocation7], 128, 128, 8
        $region16: #{tpu_custom_call.1} parent=11 // pred_fallthru
          _
        // Predicated region
        $region17: #{tpu_custom_call.1} parent=11 // pred_check
          %p214 = pneg %p118
        $region18: #{tpu_custom_call.1} parent=11 // pred_check_branch
          %216 = sbr.rel (%p214) target = $region20
        $region19: #{tpu_custom_call.1} parent=11 // pred_region
          _
        $region20: #{tpu_custom_call.1} parent=11 // pred_fallthru
          _
        // Predicated region
        $region21: #{tpu_custom_call.1} parent=11 // pred_check
          %p217 = pneg %p139
        $region22: #{tpu_custom_call.1} parent=11 // pred_check_branch
          %219 = sbr.rel (%p217) target = $region24
        $region23: #{tpu_custom_call.1} parent=11 // pred_region
          _
        $region24: #{tpu_custom_call.1} parent=11 // pred_fallthru
          _
        // Predicated region
        $region25: #{tpu_custom_call.1} parent=11 // pred_check
          %p220 = pneg %p160
        $region26: #{tpu_custom_call.1} parent=11 // pred_check_branch
          %222 = sbr.rel (%p220) target = $region28
        $region27: #{tpu_custom_call.1} parent=11 // pred_region
          _
        $region28: #{tpu_custom_call.1} parent=11 // pred_fallthru
          _
      $region12: #{tpu_custom_call.1} parent=5 // pred_fallthru
        _
      %p223 = scmp.lt.s32.totalorder %s24, 2
      // Predicated region
      $region29: #{tpu_custom_call.1} parent=5 // pred_check
        %p224 = pneg %p223
      $region30: #{tpu_custom_call.1} parent=5 // pred_check_branch
        %226 = sbr.rel (%p224) target = $region32
      $region31: #{tpu_custom_call.1} parent=5 // pred_region
        // Predicated region
        $region33: #{tpu_custom_call.1} parent=31 // pred_check
          %p227 = pneg %p44
        $region34: #{tpu_custom_call.1} parent=31 // pred_check_branch
          %229 = sbr.rel (%p227) target = $region36
        $region35: #{tpu_custom_call.1} parent=31 // pred_region
          %p230 = scmp.lt.s32.totalorder %s24, 1
          %s231 = scalar_select %p230, %s24, 1
          %s232 = smul.addr %s231, 8
          %s233 = scalar_lea.vmem %s1, %s232
        $region36: #{tpu_custom_call.1} parent=31 // pred_fallthru
          _
        // Predicated region
        $region37: #{tpu_custom_call.1} parent=31 // pred_check
          %p234 = pneg %p70
        $region38: #{tpu_custom_call.1} parent=31 // pred_check_branch
          %236 = sbr.rel (%p234) target = $region40
        $region39: #{tpu_custom_call.1} parent=31 // pred_region
          %p237 = scmp.lt.s32.totalorder %s24, 1
          %s238 = scalar_select %p237, %s24, 1
          %s239 = smul.addr %s238, 8
          %s240 = scalar_lea.vmem %s2, %s239
        $region40: #{tpu_custom_call.1} parent=31 // pred_fallthru
          _
      $region32: #{tpu_custom_call.1} parent=5 // pred_fallthru
        _
      %p241 = scmp.le.s32.totalorder 1, %s24
      %p242 = scmp.lt.s32.totalorder %s24, 3
      %p243 = pnand %p241, %p242
      %p244 = pneg %p243
      // Predicated region
      $region41: #{tpu_custom_call.1} parent=5 // pred_check
        _
      $region42: #{tpu_custom_call.1} parent=5 // pred_check_branch
        %246 = sbr.rel (%p243) target = $region44
      $region43: #{tpu_custom_call.1} parent=5 // pred_region
        %s247 = ssub.s32 %s24, 1
        // Predicated region
        $region45: #{tpu_custom_call.1} parent=43 // pred_check
          %p248 = pneg %p97
        $region46: #{tpu_custom_call.1} parent=43 // pred_check_branch
          %250 = sbr.rel (%p248) target = $region48
        $region47: #{tpu_custom_call.1} parent=43 // pred_region
          %251 = dma.done [#allocation7], 1024
        $region48: #{tpu_custom_call.1} parent=43 // pred_fallthru
          _
        %p252 = scmp.lt.s32.totalorder %s29, 1
        %s253 = scalar_select %p252, %s29, 1
        %s254 = smul.addr %s253, 8
        %s255 = scalar_lea.vmem %s1, %s254
        %p256 = pneg %p50
        %p257 = pneg %p47
        %p258 = scmp.lt.s32.totalorder %s29, 1
        %s259 = scalar_select %p258, %s29, 1
        %s260 = smul.addr %s259, 8
        %s261 = scalar_lea.vmem %s2, %s260
        %p262 = pneg %p76
        %p263 = pneg %p73
        %p264 = pneg %p97
        %p265 = pneg %p94
        %p266 = pneg %p118
        %p267 = pneg %p115
        %p268 = pneg %p139
        %p269 = pneg %p136
        %p270 = pneg %p160
        %p271 = pneg %p157
        %p272 = pneg %p186
        %p273 = pneg %p183
        %s274 = sand.u32 %s173, 1
        %s275 = scalar_lea.sflag [#allocation8], %s274
        %s276 = sand.u32 %s173, 1
        %s277 = smul.addr %s276, 16
        %s278 = scalar_lea.vmem [#allocation9], %s277
        %p279 = scmp.lt.s32.totalorder %s29, 1
        %s280 = scalar_select %p279, %s29, 1
        %s281 = smul.addr %s280, 8
        %s282 = scalar_lea.vmem %s1, %s281
        %p283 = scmp.lt.s32.totalorder %s29, 1
        %s284 = scalar_select %p283, %s29, 1
        %s285 = smul.addr %s284, 8
        %s286 = scalar_lea.vmem %s2, %s285
        %p288 = scmp.lt.s32.totalorder %s29, 0
        %s289 = ssub.s32 0, %s29
        %s290 = scalar_select %p288, %s289, %s29
        %s291 = sand.u32 %s290, 1
        %s292 = ssub.s32 0, %s291
        %s293 = scalar_select %p288, %s292, %s291
        %p294 = scmp.ne.s32.totalorder %s293, 0
        %p295 = scmp.lt.s32.totalorder %s293, 0
        %p296 = pnand %p295, %p294
        %p297 = pneg %p296
        %s298 = sadd.s32 %s293, 2
        %s299 = scalar_select %p297, %s298, %s293
        %p300 = scmp.eq.s32.totalorder %s29, 0
        // Predicated region
        $region49: #{tpu_custom_call.1} parent=43 // pred_check
          %p301 = pneg %p300
        $region50: #{tpu_custom_call.1} parent=43 // pred_check_branch
          %303 = sbr.rel (%p301) target = $region52
        $region51: #{tpu_custom_call.1} parent=43 // pred_region
          %s304 = sld [smem:[#allocation5]]
          %s305 = smul.addr %s304, 16
          %s306 = scalar_lea.hbm %s3, %s305
          // Predicated region
          $region53: #{tpu_custom_call.1} parent=51 // pred_check
            _
          $region54: #{tpu_custom_call.1} parent=51 // pred_check_branch
            %308 = sbr.rel target = $region56
          $region55: #{tpu_custom_call.1} parent=51 // pred_region
            %309 = sst [smem:[#allocation12]] [#allocation11]
            %310 = sst [smem:[#allocation13]] [#allocation10]
          $region56: #{tpu_custom_call.1} parent=51 // pred_fallthru
            _
          %312 = shalt.err (0)
          %s314 = sshll.u32 [#allocation2], 4
          %s315 = int_to_ptr.vmem [resolvable:$true] %s314
          %317 = dma.hbm_to_vmem [thread:$0]  %s306, 16, %s315, [#allocation3]
          %s318 = sld [smem:[#allocation5 + $0x1]]
          %s319 = smul.addr %s318, 16
          %s320 = scalar_lea.hbm %s3, %s319
          %s321 = scalar_lea.vmem [#allocation2], 1
          // Predicated region
          $region57: #{tpu_custom_call.1} parent=51 // pred_check
            _
          $region58: #{tpu_custom_call.1} parent=51 // pred_check_branch
            %323 = sbr.rel target = $region60
          $region59: #{tpu_custom_call.1} parent=51 // pred_region
            %324 = sst [smem:[#allocation12]] [#allocation15]
            %325 = sst [smem:[#allocation13]] [#allocation14]
          $region60: #{tpu_custom_call.1} parent=51 // pred_fallthru
            _
          %327 = shalt.err (0)
          %s329 = sshll.u32 %s321, 4
          %s330 = int_to_ptr.vmem [resolvable:$true] %s329
          %332 = dma.hbm_to_vmem [thread:$0]  %s320, 16, %s330, [#allocation3]
          %s333 = sld [smem:[#allocation5 + $0x2]]
          %s334 = smul.addr %s333, 16
          %s335 = scalar_lea.hbm %s3, %s334
          %s336 = scalar_lea.vmem [#allocation2], 2
          // Predicated region
          $region61: #{tpu_custom_call.1} parent=51 // pred_check
            _
          $region62: #{tpu_custom_call.1} parent=51 // pred_check_branch
            %338 = sbr.rel target = $region64
          $region63: #{tpu_custom_call.1} parent=51 // pred_region
            %339 = sst [smem:[#allocation12]] [#allocation17]
            %340 = sst [smem:[#allocation13]] [#allocation16]
          $region64: #{tpu_custom_call.1} parent=51 // pred_fallthru
            _
          %342 = shalt.err (0)
          %s344 = sshll.u32 %s336, 4
          %s345 = int_to_ptr.vmem [resolvable:$true] %s344
          %347 = dma.hbm_to_vmem [thread:$0]  %s335, 16, %s345, [#allocation3]
          %s348 = sld [smem:[#allocation5 + $0x3]]
          %s349 = smul.addr %s348, 16
          %s350 = scalar_lea.hbm %s3, %s349
          %s351 = scalar_lea.vmem [#allocation2], 3
          // Predicated region
          $region65: #{tpu_custom_call.1} parent=51 // pred_check
            _
          $region66: #{tpu_custom_call.1} parent=51 // pred_check_branch
            %353 = sbr.rel target = $region68
          $region67: #{tpu_custom_call.1} parent=51 // pred_region
            %354 = sst [smem:[#allocation12]] [#allocation19]
            %355 = sst [smem:[#allocation13]] [#allocation18]
          $region68: #{tpu_custom_call.1} parent=51 // pred_fallthru
            _
          %357 = shalt.err (0)
          %s359 = sshll.u32 %s351, 4
          %s360 = int_to_ptr.vmem [resolvable:$true] %s359
          %362 = dma.hbm_to_vmem [thread:$0]  %s350, 16, %s360, [#allocation3]
          %s363 = sld [smem:[#allocation5 + $0x4]]
          %s364 = smul.addr %s363, 16
          %s365 = scalar_lea.hbm %s3, %s364
          %s366 = scalar_lea.vmem [#allocation2], 4
          // Predicated region
          $region69: #{tpu_custom_call.1} parent=51 // pred_check
            _
          $region70: #{tpu_custom_call.1} parent=51 // pred_check_branch
            %368 = sbr.rel target = $region72
          $region71: #{tpu_custom_call.1} parent=51 // pred_region
            %369 = sst [smem:[#allocation12]] [#allocation21]
            %370 = sst [smem:[#allocation13]] [#allocation20]
          $region72: #{tpu_custom_call.1} parent=51 // pred_fallthru
            _
          %372 = shalt.err (0)
          %s374 = sshll.u32 %s366, 4
          %s375 = int_to_ptr.vmem [resolvable:$true] %s374
          %377 = dma.hbm_to_vmem [thread:$0]  %s365, 16, %s375, [#allocation3]
          %s378 = sld [smem:[#allocation5 + $0x5]]
          %s379 = smul.addr %s378, 16
          %s380 = scalar_lea.hbm %s3, %s379
          %s381 = scalar_lea.vmem [#allocation2], 5
          // Predicated region
          $region73: #{tpu_custom_call.1} parent=51 // pred_check
            _
          $region74: #{tpu_custom_call.1} parent=51 // pred_check_branch
            %383 = sbr.rel target = $region76
          $region75: #{tpu_custom_call.1} parent=51 // pred_region
            %384 = sst [smem:[#allocation12]] [#allocation23]
            %385 = sst [smem:[#allocation13]] [#allocation22]
          $region76: #{tpu_custom_call.1} parent=51 // pred_fallthru
            _
          %387 = shalt.err (0)
          %s389 = sshll.u32 %s381, 4
          %s390 = int_to_ptr.vmem [resolvable:$true] %s389
          %392 = dma.hbm_to_vmem [thread:$0]  %s380, 16, %s390, [#allocation3]
          %s393 = sld [smem:[#allocation5 + $0x6]]
          %s394 = smul.addr %s393, 16
          %s395 = scalar_lea.hbm %s3, %s394
          %s396 = scalar_lea.vmem [#allocation2], 6
          // Predicated region
          $region77: #{tpu_custom_call.1} parent=51 // pred_check
            _
          $region78: #{tpu_custom_call.1} parent=51 // pred_check_branch
            %398 = sbr.rel target = $region80
          $region79: #{tpu_custom_call.1} parent=51 // pred_region
            %399 = sst [smem:[#allocation12]] [#allocation25]
            %400 = sst [smem:[#allocation13]] [#allocation24]
          $region80: #{tpu_custom_call.1} parent=51 // pred_fallthru
            _
          %402 = shalt.err (0)
          %s404 = sshll.u32 %s396, 4
          %s405 = int_to_ptr.vmem [resolvable:$true] %s404
          %407 = dma.hbm_to_vmem [thread:$0]  %s395, 16, %s405, [#allocation3]
          %s408 = sld [smem:[#allocation5 + $0x7]]
          %s409 = smul.addr %s408, 16
          %s410 = scalar_lea.hbm %s3, %s409
          %s411 = scalar_lea.vmem [#allocation2], 7
          // Predicated region
          $region81: #{tpu_custom_call.1} parent=51 // pred_check
            _
          $region82: #{tpu_custom_call.1} parent=51 // pred_check_branch
            %413 = sbr.rel target = $region84
          $region83: #{tpu_custom_call.1} parent=51 // pred_region
            %414 = sst [smem:[#allocation12]] [#allocation27]
            %415 = sst [smem:[#allocation13]] [#allocation26]
          $region84: #{tpu_custom_call.1} parent=51 // pred_fallthru
            _
          %417 = shalt.err (0)
          %s419 = sshll.u32 %s411, 4
          %s420 = int_to_ptr.vmem [resolvable:$true] %s419
          %422 = dma.hbm_to_vmem [thread:$0]  %s410, 16, %s420, [#allocation3]
        $region52: #{tpu_custom_call.1} parent=43 // pred_fallthru
          _
        %s423 = sadd.s32 %s29, 1
        %p424 = scmp.lt.s32.totalorder %s423, 2
        // Predicated region
        $region85: #{tpu_custom_call.1} parent=43 // pred_check
          %p425 = pneg %p424
        $region86: #{tpu_custom_call.1} parent=43 // pred_check_branch
          %427 = sbr.rel (%p425) target = $region88
        $region87: #{tpu_custom_call.1} parent=43 // pred_region
          %p428 = scmp.lt.s32.totalorder %s423, 0
          %s429 = ssub.s32 0, %s423
          %s430 = scalar_select %p428, %s429, %s423
          %s431 = sand.u32 %s430, 1
          %s432 = ssub.s32 0, %s431
          %s433 = scalar_select %p428, %s432, %s431
          %p434 = scmp.ne.s32.totalorder %s433, 0
          %p435 = scmp.lt.s32.totalorder %s433, 0
          %p436 = pnand %p435, %p434
          %p437 = pneg %p436
          %s438 = sadd.s32 %s433, 2
          %s439 = scalar_select %p437, %s438, %s433
          %s440 = smul.u32 %s423, 8
          %s441 = smul.u32 %s439, 8
          %s442 = sld [smem:[#allocation5 + %s440]]
          %s443 = smul.addr %s442, 16
          %s444 = scalar_lea.hbm %s3, %s443
          %s445 = scalar_lea.vmem [#allocation2], %s441
          %s446 = scalar_lea.sflag [#allocation3], %s439
          // Predicated region
          $region89: #{tpu_custom_call.1} parent=87 // pred_check
            _
          $region90: #{tpu_custom_call.1} parent=87 // pred_check_branch
            %448 = sbr.rel target = $region92
          $region91: #{tpu_custom_call.1} parent=87 // pred_region
            %449 = sst [smem:[#allocation12]] [#allocation29]
            %450 = sst [smem:[#allocation13]] [#allocation28]
          $region92: #{tpu_custom_call.1} parent=87 // pred_fallthru
            _
          %452 = shalt.err (0)
          %s454 = sshll.u32 %s445, 4
          %s455 = int_to_ptr.vmem [resolvable:$true] %s454
          %457 = dma.hbm_to_vmem [thread:$0]  %s444, 16, %s455, %s446
          %s458 = sadd.s32 %s440, 1
          %s459 = sld [smem:[#allocation5 + %s458]]
          %s460 = sadd.s32 %s441, 1
          %s461 = smul.addr %s459, 16
          %s462 = scalar_lea.hbm %s3, %s461
          %s463 = scalar_lea.vmem [#allocation2], %s460
          // Predicated region
          $region93: #{tpu_custom_call.1} parent=87 // pred_check
            _
          $region94: #{tpu_custom_call.1} parent=87 // pred_check_branch
            %465 = sbr.rel target = $region96
          $region95: #{tpu_custom_call.1} parent=87 // pred_region
            %466 = sst [smem:[#allocation12]] [#allocation31]
            %467 = sst [smem:[#allocation13]] [#allocation30]
          $region96: #{tpu_custom_call.1} parent=87 // pred_fallthru
            _
          %469 = shalt.err (0)
          %s471 = sshll.u32 %s463, 4
          %s472 = int_to_ptr.vmem [resolvable:$true] %s471
          %474 = dma.hbm_to_vmem [thread:$0]  %s462, 16, %s472, %s446
          %s475 = sadd.s32 %s440, 2
          %s476 = sld [smem:[#allocation5 + %s475]]
          %s477 = sadd.s32 %s441, 2
          %s478 = smul.addr %s476, 16
          %s479 = scalar_lea.hbm %s3, %s478
          %s480 = scalar_lea.vmem [#allocation2], %s477
          // Predicated region
          $region97: #{tpu_custom_call.1} parent=87 // pred_check
            _
          $region98: #{tpu_custom_call.1} parent=87 // pred_check_branch
            %482 = sbr.rel target = $region100
          $region99: #{tpu_custom_call.1} parent=87 // pred_region
            %483 = sst [smem:[#allocation12]] [#allocation33]
            %484 = sst [smem:[#allocation13]] [#allocation32]
          $region100: #{tpu_custom_call.1} parent=87 // pred_fallthru
            _
          %486 = shalt.err (0)
          %s488 = sshll.u32 %s480, 4
          %s489 = int_to_ptr.vmem [resolvable:$true] %s488
          %491 = dma.hbm_to_vmem [thread:$0]  %s479, 16, %s489, %s446
          %s492 = sadd.s32 %s440, 3
          %s493 = sld [smem:[#allocation5 + %s492]]
          %s494 = sadd.s32 %s441, 3
          %s495 = smul.addr %s493, 16
          %s496 = scalar_lea.hbm %s3, %s495
          %s497 = scalar_lea.vmem [#allocation2], %s494
          // Predicated region
          $region101: #{tpu_custom_call.1} parent=87 // pred_check
            _
          $region102: #{tpu_custom_call.1} parent=87 // pred_check_branch
            %499 = sbr.rel target = $region104
          $region103: #{tpu_custom_call.1} parent=87 // pred_region
            %500 = sst [smem:[#allocation12]] [#allocation35]
            %501 = sst [smem:[#allocation13]] [#allocation34]
          $region104: #{tpu_custom_call.1} parent=87 // pred_fallthru
            _
          %503 = shalt.err (0)
          %s505 = sshll.u32 %s497, 4
          %s506 = int_to_ptr.vmem [resolvable:$true] %s505
          %508 = dma.hbm_to_vmem [thread:$0]  %s496, 16, %s506, %s446
          %s509 = sadd.s32 %s440, 4
          %s510 = sld [smem:[#allocation5 + %s509]]
          %s511 = sadd.s32 %s441, 4
          %s512 = smul.addr %s510, 16
          %s513 = scalar_lea.hbm %s3, %s512
          %s514 = scalar_lea.vmem [#allocation2], %s511
          // Predicated region
          $region105: #{tpu_custom_call.1} parent=87 // pred_check
            _
          $region106: #{tpu_custom_call.1} parent=87 // pred_check_branch
            %516 = sbr.rel target = $region108
          $region107: #{tpu_custom_call.1} parent=87 // pred_region
            %517 = sst [smem:[#allocation12]] [#allocation37]
            %518 = sst [smem:[#allocation13]] [#allocation36]
          $region108: #{tpu_custom_call.1} parent=87 // pred_fallthru
            _
          %520 = shalt.err (0)
          %s522 = sshll.u32 %s514, 4
          %s523 = int_to_ptr.vmem [resolvable:$true] %s522
          %525 = dma.hbm_to_vmem [thread:$0]  %s513, 16, %s523, %s446
          %s526 = sadd.s32 %s440, 5
          %s527 = sld [smem:[#allocation5 + %s526]]
          %s528 = sadd.s32 %s441, 5
          %s529 = smul.addr %s527, 16
          %s530 = scalar_lea.hbm %s3, %s529
          %s531 = scalar_lea.vmem [#allocation2], %s528
          // Predicated region
          $region109: #{tpu_custom_call.1} parent=87 // pred_check
            _
          $region110: #{tpu_custom_call.1} parent=87 // pred_check_branch
            %533 = sbr.rel target = $region112
          $region111: #{tpu_custom_call.1} parent=87 // pred_region
            %534 = sst [smem:[#allocation12]] [#allocation39]
            %535 = sst [smem:[#allocation13]] [#allocation38]
          $region112: #{tpu_custom_call.1} parent=87 // pred_fallthru
            _
          %537 = shalt.err (0)
          %s539 = sshll.u32 %s531, 4
          %s540 = int_to_ptr.vmem [resolvable:$true] %s539
          %542 = dma.hbm_to_vmem [thread:$0]  %s530, 16, %s540, %s446
          %s543 = sadd.s32 %s440, 6
          %s544 = sld [smem:[#allocation5 + %s543]]
          %s545 = sadd.s32 %s441, 6
          %s546 = smul.addr %s544, 16
          %s547 = scalar_lea.hbm %s3, %s546
          %s548 = scalar_lea.vmem [#allocation2], %s545
          // Predicated region
          $region113: #{tpu_custom_call.1} parent=87 // pred_check
            _
          $region114: #{tpu_custom_call.1} parent=87 // pred_check_branch
            %550 = sbr.rel target = $region116
          $region115: #{tpu_custom_call.1} parent=87 // pred_region
            %551 = sst [smem:[#allocation12]] [#allocation41]
            %552 = sst [smem:[#allocation13]] [#allocation40]
          $region116: #{tpu_custom_call.1} parent=87 // pred_fallthru
            _
          %554 = shalt.err (0)
          %s556 = sshll.u32 %s548, 4
          %s557 = int_to_ptr.vmem [resolvable:$true] %s556
          %559 = dma.hbm_to_vmem [thread:$0]  %s547, 16, %s557, %s446
          %s560 = sadd.s32 %s440, 7
          %s561 = sld [smem:[#allocation5 + %s560]]
          %s562 = sadd.s32 %s441, 7
          %s563 = smul.addr %s561, 16
          %s564 = scalar_lea.hbm %s3, %s563
          %s565 = scalar_lea.vmem [#allocation2], %s562
          // Predicated region
          $region117: #{tpu_custom_call.1} parent=87 // pred_check
            _
          $region118: #{tpu_custom_call.1} parent=87 // pred_check_branch
            %567 = sbr.rel target = $region120
          $region119: #{tpu_custom_call.1} parent=87 // pred_region
            %568 = sst [smem:[#allocation12]] [#allocation43]
            %569 = sst [smem:[#allocation13]] [#allocation42]
          $region120: #{tpu_custom_call.1} parent=87 // pred_fallthru
            _
          %571 = shalt.err (0)
          %s573 = sshll.u32 %s565, 4
          %s574 = int_to_ptr.vmem [resolvable:$true] %s573
          %576 = dma.hbm_to_vmem [thread:$0]  %s564, 16, %s574, %s446
        $region88: #{tpu_custom_call.1} parent=43 // pred_fallthru
          _
        %v577 = vld [vmem:[%s282] sm:$0xff]
        %v578 = vlaneseq
        %v579 = vand.u32 %v578, 127
        %580 = vset.pattern.permute.xlu0 0
        %581 = vperm.xlu0 %580, %v577
        %v582 = vpop.permute.xlu0 %581
        %vm583 = vcmp.eq.s32.totalorder %v579, %v582
        %v584 = vsel %vm583, 1, 0
        %v585 = vcvt.s32.f32 %v584
        %v586 = vpack.c.bf16 %v585, %v585
        %v587 = vld [vmem:[#allocation6] sm:$0xff]
        %v588 = vld [vmem:[#allocation6 + $0x8] sm:$0xff]
        %v589 = vld [vmem:[#allocation6 + $0x10] sm:$0xff]
        %v590 = vld [vmem:[#allocation6 + $0x18] sm:$0xff]
        %v591 = vld [vmem:[#allocation6 + $0x20] sm:$0xff]
        %v592 = vld [vmem:[#allocation6 + $0x28] sm:$0xff]
        %v593 = vld [vmem:[#allocation6 + $0x30] sm:$0xff]
        %v594 = vld [vmem:[#allocation6 + $0x38] sm:$0xff]
        %v603 = vunpack.c.l.b16 %v587
        %v604 = vunpack.c.h.b16 %v587
        %v605 = vunpack.c.l.b16 %v588
        %v606 = vunpack.c.h.b16 %v588
        %v607 = vunpack.c.l.b16 %v589
        %v608 = vunpack.c.h.b16 %v589
        %v609 = vunpack.c.l.b16 %v590
        %v610 = vunpack.c.h.b16 %v590
        %v611 = vunpack.c.l.b16 %v591
        %v612 = vunpack.c.h.b16 %v591
        %v613 = vunpack.c.l.b16 %v592
        %v614 = vunpack.c.h.b16 %v592
        %v615 = vunpack.c.l.b16 %v593
        %v616 = vunpack.c.h.b16 %v593
        %v617 = vunpack.c.l.b16 %v594
        %v618 = vunpack.c.h.b16 %v594
        %v619 = vpack.c.b16 %v605, %v603
        %v620 = vpack.c.b16 %v606, %v604
        %v621 = vpack.c.b16 %v609, %v607
        %v622 = vpack.c.b16 %v610, %v608
        %v623 = vpack.c.b16 %v613, %v611
        %v624 = vpack.c.b16 %v614, %v612
        %v625 = vpack.c.b16 %v617, %v615
        %v626 = vpack.c.b16 %v618, %v616
        %vm635 = vcmask 523264
        %v637 = vsel %vm635, %v586, 0
        %639 = vmatprep.subr.bf16.mxu0 %v620
        %640 = vmatpush1.bf16.msra.mxu0 %v619
        %641 = vmatprep.subr.bf16.mxu0 %v622
        %642 = vmatpush1.bf16.msra.mxu0 %v621
        %643 = vmatprep.subr.bf16.mxu0 %v624
        %644 = vmatpush1.bf16.msra.mxu0 %v623
        %645 = vmatprep.subr.bf16.mxu0 %v626
        %646 = vmatpush1.bf16.msra.mxu0 %v625
        %647 = vmatprep.subr.bf16.mxu0 0
        %648 = vmatpush1.bf16.msra.mxu0 0
        %649 = vmatprep.subr.bf16.mxu0 0
        %650 = vmatpush1.bf16.msra.mxu0 0
        %651 = vmatprep.subr.bf16.mxu0 0
        %652 = vmatpush1.bf16.msra.mxu0 0
        %653 = vmatprep.subr.bf16.mxu0 0
        %654 = vmatpush1.bf16.msra.mxu0 0
        %655 = vmatprep.subr.bf16.mxu0 0
        %656 = vmatpush1.bf16.msra.mxu0 0
        %657 = vmatprep.subr.bf16.mxu0 0
        %658 = vmatpush1.bf16.msra.mxu0 0
        %659 = vmatprep.subr.bf16.mxu0 0
        %660 = vmatpush1.bf16.msra.mxu0 0
        %661 = vmatprep.subr.bf16.mxu0 0
        %662 = vmatpush1.bf16.msra.mxu0 0
        %663 = vmatprep.subr.bf16.mxu0 0
        %664 = vmatpush1.bf16.msra.mxu0 0
        %665 = vmatprep.subr.bf16.mxu0 0
        %666 = vmatpush1.bf16.msra.mxu0 0
        %667 = vmatprep.subr.bf16.mxu0 0
        %668 = vmatpush1.bf16.msra.mxu0 0
        %669 = vmatprep.subr.bf16.mxu0 0
        %670 = vmatpush1.bf16.msra.mxu0 0
        %671 = vmatprep.mubr.bf16.mxu0 0
        %672 = vmatmul.mubr.bf16.gmra.mrb[0].mxu0 %v637
        %v673 = vpop.f32.mrb[0].mxu0
        %v674 = vadd.f32 0.0, %v673
        %v675 = vpop.f32.mrb[0].mxu0
        %v676 = vadd.f32 0.0, %v675
        %v677 = vpop.f32.mrb[0].mxu0
        %v678 = vpop.f32.mrb[0].mxu0
        %679 = vdwg.mxu0
        %v680 = vld [vmem:[%s286] sm:$0xff]
        %v681 = vld [vmem:[%s5] ss:$2 sm:$0x3]
        %v683 = vlaneseq
        %v684 = vshrl.u32 %v683, 7
        %v685 = vsub.s32 0, %v684
        %v686 = vrot.slane %v681, %v685
        %v687 = vlaneseq
        %v688 = vshrl.u32 %v687, 7
        %v689 = vsub.s32 1, %v688
        %v690 = vrot.slane %v681, %v689
        %vm693 = vcmp.eq.s32.totalorder %v680, 1
        %s694 = scalar_lea.vmem %s5, 1
        %v695 = vld [vmem:[%s694] ss:$2 sm:$0x3]
        %v696 = vsel %vm693, 1, 0
        %697 = vset.pattern.permute.xlu0 0
        %698 = vperm.xlu0 %697, %v696
        %v699 = vpop.permute.xlu0 %698
        %vm700 = vcmp.eq.s32.totalorder %v699, 1
        %v702 = vlaneseq
        %v703 = vshrl.u32 %v702, 7
        %v704 = vsub.s32 0, %v703
        %v705 = vrot.slane %v695, %v704
        %v706 = vlaneseq
        %v707 = vshrl.u32 %v706, 7
        %v708 = vsub.s32 1, %v707
        %v709 = vrot.slane %v695, %v708
        %v712 = vsel %vm700, %v705, %v686
        %v713 = vsel %vm700, %v709, %v690
        %s714 = smul.u32 %s299, 8
        %s715 = scalar_lea.vmem [#allocation2], %s714
        %s716 = scalar_lea.sflag [#allocation3], %s299
        %s717 = smul.u32 8, 1
        %s718 = sshll.u32 %s717, 4
        %719 = dma.done %s716, %s718
        %v720 = vld [vmem:[%s715] sm:$0xff]
        %v721 = vshll.u32 %v720, 16
        %v723 = vand.u32 %v720, 4294901760
        %v725 = vadd.f32 %v721, %v674
        %v726 = vadd.f32 %v723, %v676
        %v727 = vadd.f32 %v725, %v712
        %v728 = vadd.f32 %v726, %v713
        %v729 = vadd.f32 %v727, %v728
        %730 = vadd.xlane.f32.xlu0 %v729
        %v731 = vpop.xlane.xlu0 %730
        %v732 = vrcp.pop 256.0
        %v733 = vmul.f32 %v731, %v732
        %v734 = vsub.f32 %v727, %v733
        %v735 = vsub.f32 %v728, %v733
        %v736 = vmul.f32 %v734, %v734
        %v737 = vmul.f32 %v735, %v735
        %v738 = vadd.f32 %v736, %v737
        %739 = vadd.xlane.f32.xlu0 %v738
        %v740 = vpop.xlane.xlu0 %739
        %v741 = vmul.f32 %v740, %v732
        %v742 = vadd.f32 %v741, 1e-05
        %v743 = vrsqrt.pop %v742
        %v744 = vmul.f32 %v734, %v743
        %v745 = vmul.f32 %v735, %v743
        %v746 = vld [vmem:[%s6] sm:$0x3]
        %v748 = vlaneseq
        %v749 = vshrl.u32 %v748, 7
        %v750 = vsub.s32 0, %v749
        %v751 = vrot.slane %v746, %v750
        %v752 = vlaneseq
        %v753 = vshrl.u32 %v752, 7
        %v754 = vsub.s32 1, %v753
        %v755 = vrot.slane %v746, %v754
        %v758 = vmul.f32 %v744, %v751
        %v759 = vmul.f32 %v745, %v755
        %v760 = vld [vmem:[%s7] sm:$0x3]
        %v762 = vlaneseq
        %v763 = vshrl.u32 %v762, 7
        %v764 = vsub.s32 0, %v763
        %v765 = vrot.slane %v760, %v764
        %v766 = vlaneseq
        %v767 = vshrl.u32 %v766, 7
        %v768 = vsub.s32 1, %v767
        %v769 = vrot.slane %v760, %v768
        %v772 = vadd.f32 %v758, %v765
        %v773 = vadd.f32 %v759, %v769
        %774 = vst [vmem:[%s278] sm:$0xff] %v772
        %775 = vst [vmem:[%s278 + $0x8] sm:$0xff] %v773
        %s776 = sand.u32 %s173, 1
        %s777 = scalar_lea.sflag [#allocation8], %s776
        %s778 = sand.u32 %s173, 1
        %s779 = smul.addr %s778, 16
        %s780 = scalar_lea.vmem [#allocation9], %s779
        // Predicated region
        $region121: #{tpu_custom_call.1} parent=43 // pred_check
          %p781 = pneg %p183
        $region122: #{tpu_custom_call.1} parent=43 // pred_check_branch
          %783 = sbr.rel (%p781) target = $region124
        $region123: #{tpu_custom_call.1} parent=43 // pred_region
          %s785 = ssub.s32 256, 256
          %786 = vsyncadd %s777, %s785
          %s787 = smul.addr %s29, 2
          %s788 = smul.addr %s787, 128
          %s789 = scalar_lea.hbm %s8, %s788
          %s791 = sshll.u32 %s780, 4
          %s792 = int_to_ptr.vmem [resolvable:$true] %s791
          %794 = dma.vmem_to_hbm [thread:$0]  %s792, 256, %s789, %s777
        $region124: #{tpu_custom_call.1} parent=43 // pred_fallthru
          _
      $region44: #{tpu_custom_call.1} parent=5 // pred_fallthru
        _
      %p795 = scmp.le.s32.totalorder 2, %s24
      // Predicated region
      $region125: #{tpu_custom_call.1} parent=5 // pred_check
        %p796 = pneg %p795
      $region126: #{tpu_custom_call.1} parent=5 // pred_check_branch
        %798 = sbr.rel (%p796) target = $region128
      $region127: #{tpu_custom_call.1} parent=5 // pred_region
        %s799 = ssub.s32 %s24, 2
        // Predicated region
        $region129: #{tpu_custom_call.1} parent=127 // pred_check
          %p800 = pneg %p189
        $region130: #{tpu_custom_call.1} parent=127 // pred_check_branch
          %802 = sbr.rel (%p800) target = $region132
        $region131: #{tpu_custom_call.1} parent=127 // pred_region
          %s803 = sand.u32 %s174, 1
          %s804 = scalar_lea.sflag [#allocation8], %s803
          %s805 = sand.u32 %s174, 1
          %s806 = smul.addr %s805, 16
          %s807 = scalar_lea.vmem [#allocation9], %s806
          %808 = dma.done %s804, 256
        $region132: #{tpu_custom_call.1} parent=127 // pred_fallthru
          _
      $region128: #{tpu_custom_call.1} parent=5 // pred_fallthru
        _
    $region6: #{tpu_custom_call.1} parent=1 // loop_footer
      %s28 = sadd.s32 1, %s24
    $region7: #{tpu_custom_call.1} parent=1 // loop_footer_branch
      %23 = sbr.rel target = $region3
    $region8: #{tpu_custom_call.1} parent=1 // loop_exit
      _
    %809 = vsyncpa [#allocation7], 1
    %s810 = scalar_lea.sflag [#allocation7], 1
    %811 = vsyncpa %s810, 1
    %812 = vsyncpa [#allocation8], 1
    %s813 = scalar_lea.sflag [#allocation8], 1
    %814 = vsyncpa %s813, 1
  %815 = vsyncmov [#allocation3]
  %s816 = vpop.sfrf %815
  %p817 = scmp.eq.s32.totalorder %s816, 0
  %p818 = pneg %p817
  %820 = shalt.err (%p818)
  %s821 = scalar_lea.sflag [#allocation3], 1
  %822 = vsyncmov %s821
  %s823 = vpop.sfrf %822
  %p824 = scmp.eq.s32.totalorder %s823, 0
  %p825 = pneg %p824
  %827 = shalt.err (%p825)

</llo_original>
